<compile_context>
chip_gen: v6e
topology: v6e:2x2x1
jax: 0.10.0
libtpu: 0.0.40
codegen_flags: <defaults>
</compile_context>

<pallas_src>
import jax
import jax.numpy as jnp
from jax.experimental import pallas as pl
from jax.experimental.pallas import tpu as pltpu


def _make_aspp_kernel(Cout, M, shifts):
    """Kernel for one batch element (batch dim squeezed by the BlockSpec).

    Refs:
      x_ref : (Cin, L)           bf16 zero-padded flat image (padded in wrapper).
      w_ref : (n_taps, Cout, Cin) bf16 folded weights of conv0|conv1, tap-major.
      b_ref : (Cout, 1)          f32 folded bias (b0 + b1).
      o_ref : (Cout, M)          f32 lane-dense output slab, M = H*Wp.
    """

    def kernel(x_ref, w_ref, b_ref, o_ref):
        acc = jnp.zeros((Cout, M), jnp.float32)
        # 18 static taps, unrolled: each tap is a pure lane-offset window of the
        # flat padded image feeding one small bf16 MXU contraction, f32 accumulate.
        for t, s in enumerate(shifts):
            acc = acc + jnp.dot(w_ref[t], x_ref[:, pl.ds(s, M)],
                                preferred_element_type=jnp.float32)
        o_ref[...] = (acc + b_ref[...]).astype(o_ref.dtype)

    return kernel


def classifier_module_forward(x_nchw, weights, biases, dilations, paddings):
    """x_nchw: (N, Cin, H, W). weights[i]: (Cout, Cin, 3, 3). biases[i]: (Cout,).

    Returns (N, Cout, H, W) == conv0(x) + conv1(x)  (PyTorch early-return
    semantics of Classifier_Module.forward).
    """
    N, Cin, H, W = x_nchw.shape
    Cout = weights[0].shape[0]
    assert len(weights) >= 2 and len(biases) >= 2, "forward needs >= 2 convs"

    # Only the first two convolutions participate in the output.
    dils = tuple(int(d) for d in dilations[:2])
    pads = tuple(int(p) for p in paddings[:2])
    for d, p in zip(dils, pads):
        # ASPP configuration: padding == dilation keeps the spatial size and
        # makes every tap a pure lane-offset window into one padded slab.
        assert d == p, "Classifier_Module kernel assumes padding == dilation"
    P = max(pads)
    Wp = W + 2 * P
    M = H * Wp                      # lane-dense output slab width (384 here)

    # Static per-tap lane shifts into the row-major flat padded image.
    shifts = []
    for d, p in zip(dils, pads):
        off0 = P - p
        for ky in range(3):
            for kx in range(3):
                shifts.append((off0 + ky * d) * Wp + (off0 + kx * d))
    n_taps = len(shifts)

    # Rows of zero padding: P on top/left/right; enough extra rows at the
    # bottom that the widest tap window (max_shift + M) stays inside the slab
    # (only discarded garbage output columns ever read those tail rows).
    L_rows = max(H + 2 * P, -(-(max(shifts) + M) // Wp))
    pad_bot = L_rows - P - H
    L = L_rows * Wp

    # --- Layout plumbing in plain JAX (pad once, fold weights/bias, cast). ---
    x_pad = jnp.pad(x_nchw.astype(jnp.bfloat16),
                    ((0, 0), (0, 0), (P, pad_bot), (P, P)))
    x_flat = x_pad.reshape(N, Cin, L)                              # bf16

    # Weights stacked tap-major in the same order as `shifts`: (18, Cout, Cin).
    w_taps = jnp.concatenate(
        [jnp.transpose(w.astype(jnp.bfloat16), (2, 3, 0, 1)).reshape(9, Cout, Cin)
         for w in weights[:2]],
        axis=0)
    b_sum = (biases[0] + biases[1]).astype(jnp.float32).reshape(Cout, 1)

    kernel = _make_aspp_kernel(Cout, M, shifts)

    out_slab = pl.pallas_call(
        kernel,
        out_shape=jax.ShapeDtypeStruct((N, Cout, M), jnp.float32),
        grid_spec=pltpu.PrefetchScalarGridSpec(
            num_scalar_prefetch=0,
            grid=(N,),
            in_specs=[
                pl.BlockSpec((None, Cin, L), lambda n: (n, 0, 0)),
                pl.BlockSpec((n_taps, Cout, Cin), lambda n: (0, 0, 0)),
                pl.BlockSpec((Cout, 1), lambda n: (0, 0)),
            ],
            out_specs=pl.BlockSpec((None, Cout, M), lambda n: (n, 0, 0)),
        ),
        compiler_params=pltpu.CompilerParams(
            dimension_semantics=("parallel",),   # batch axis shards across TCs
        ),
    )(x_flat, w_taps, b_sum)

    # Drop the (Wp - W) garbage columns and return NCHW — pure layout plumbing.
    return out_slab.reshape(N, Cout, H, Wp)[:, :, :, :W]


def init_classifier_module(key, inplanes, dilation_series, padding_series, num_classes):
    """Deterministic parameter init mirroring the PyTorch module:
    weight ~ N(0, 0.01), bias ~ default Conv2d init U(-1/sqrt(fan_in), 1/sqrt(fan_in))."""
    weights, biases = [], []
    fan_in = inplanes * 3 * 3
    bound = 1.0 / jnp.sqrt(jnp.float32(fan_in))
    for i, _ in enumerate(dilation_series):
        kw, kb = jax.random.split(jax.random.fold_in(key, i))
        w = 0.01 * jax.random.normal(kw, (num_classes, inplanes, 3, 3), jnp.float32)
        b = jax.random.uniform(kb, (num_classes,), jnp.float32, -bound, bound)
        weights.append(w)
        biases.append(b)
    return weights, biases


def _reference_forward(x_nchw, weights, biases, dilations, paddings):
    """Pure-JAX reference (lax conv) of the same PyTorch semantics, for checking."""
    def conv(i):
        y = jax.lax.conv_general_dilated(
            x_nchw, weights[i],
            window_strides=(1, 1),
            padding=((paddings[i], paddings[i]), (paddings[i], paddings[i])),
            rhs_dilation=(dilations[i], dilations[i]),
            dimension_numbers=("NCHW", "OIHW", "NCHW"),
            precision=jax.lax.Precision.HIGHEST,
        )
        return y + biases[i].reshape(1, -1, 1, 1)
    return conv(0) + conv(1)


if __name__ == "__main__":
    key = jax.random.PRNGKey(0)
    k_x, k_p = jax.random.split(key)

    # Small shapes consistent with the module: NCHW input.
    N, Cin, H, W = 2, 4, 16, 16
    num_classes = 6
    dilation_series = [2, 4, 6, 8]
    padding_series = [2, 4, 6, 8]

    x = jax.random.normal(k_x, (N, Cin, H, W), jnp.float32)
    weights, biases = init_classifier_module(
        k_p, Cin, dilation_series, padding_series, num_classes)

    out = classifier_module_forward(x, weights, biases, dilation_series, padding_series)
    out = jax.block_until_ready(out)

    # Reference built from the same bf16-rounded operands the kernel feeds the
    # MXU (accumulation stays f32 in both paths).
    xq = x.astype(jnp.bfloat16).astype(jnp.float32)
    wq = [w.astype(jnp.bfloat16).astype(jnp.float32) for w in weights]
    ref = _reference_forward(xq, wq, biases, dilation_series, padding_series)

    assert out.shape == (N, num_classes, H, W)
    assert jnp.allclose(out, ref, atol=1e-3, rtol=1e-3), "mismatch vs reference"

    print("KERNEL_OK")
</pallas_src>

<mosaic_0001>
module attributes {stable_mosaic.version = 11 : i64} {
  func.func @kernel(%arg0: i32, %arg1: memref<1x4x600xbf16, #tpu.memory_space<vmem>>, %arg2: memref<18x6x4xbf16, #tpu.memory_space<vmem>>, %arg3: memref<6x1xf32, #tpu.memory_space<vmem>>, %arg4: memref<1x6x384xf32, #tpu.memory_space<vmem>>) attributes {dimension_semantics = [#tpu.dimension_semantics<parallel>], iteration_bounds = array<i64: 2>, scalar_prefetch = 0 : i64, scratch_operands = 0 : i64, tpu.core_type = #tpu.core_type<tc>, window_params = [{transform_indices = @transform_0, window_bounds = array<i64: 1, 4, 600>}, {pipeline_mode = #tpu.pipeline_mode<synchronous>, transform_indices = @transform_1, window_bounds = array<i64: 18, 6, 4>}, {pipeline_mode = #tpu.pipeline_mode<synchronous>, transform_indices = @transform_2, window_bounds = array<i64: 6, 1>}, {transform_indices = @transform_3, window_bounds = array<i64: 1, 6, 384>}]} {
    %cst = arith.constant 0.000000e+00 : f32
    %0 = vector.broadcast %cst : f32 to vector<6x384xf32>
    %c0 = arith.constant 0 : index
    %c0_0 = arith.constant 0 : index
    %c0_1 = arith.constant 0 : index
    %1 = vector.load %arg2[%c0, %c0_0, %c0_1] : memref<18x6x4xbf16, #tpu.memory_space<vmem>>, vector<1x6x4xbf16>
    %2 = vector.shape_cast %1 : vector<1x6x4xbf16> to vector<6x4xbf16>
    %c0_2 = arith.constant 0 : index
    %c0_3 = arith.constant 0 : index
    %c50 = arith.constant 50 : index
    %3 = vector.load %arg1[%c0_2, %c0_3, %c50] : memref<1x4x600xbf16, #tpu.memory_space<vmem>>, vector<1x4x384xbf16>
    %4 = vector.shape_cast %3 : vector<1x4x384xbf16> to vector<4x384xbf16>
    %cst_4 = arith.constant dense<0.000000e+00> : vector<6x384xf32>
    %5 = tpu.matmul %2, %4, %cst_4 {dimension_numbers = #tpu.dot_dimension_numbers<[1], [0], [0], [1], [0, 0, 1, 1], [], []>} : vector<6x4xbf16>, vector<4x384xbf16>, vector<6x384xf32> -> vector<6x384xf32>
    %6 = arith.addf %0, %5 : vector<6x384xf32>
    %c1 = arith.constant 1 : index
    %c0_5 = arith.constant 0 : index
    %c0_6 = arith.constant 0 : index
    %7 = vector.load %arg2[%c1, %c0_5, %c0_6] : memref<18x6x4xbf16, #tpu.memory_space<vmem>>, vector<1x6x4xbf16>
    %8 = vector.shape_cast %7 : vector<1x6x4xbf16> to vector<6x4xbf16>
    %c0_7 = arith.constant 0 : index
    %c0_8 = arith.constant 0 : index
    %c52 = arith.constant 52 : index
    %9 = vector.load %arg1[%c0_7, %c0_8, %c52] : memref<1x4x600xbf16, #tpu.memory_space<vmem>>, vector<1x4x384xbf16>
    %10 = vector.shape_cast %9 : vector<1x4x384xbf16> to vector<4x384xbf16>
    %cst_9 = arith.constant dense<0.000000e+00> : vector<6x384xf32>
    %11 = tpu.matmul %8, %10, %cst_9 {dimension_numbers = #tpu.dot_dimension_numbers<[1], [0], [0], [1], [0, 0, 1, 1], [], []>} : vector<6x4xbf16>, vector<4x384xbf16>, vector<6x384xf32> -> vector<6x384xf32>
    %12 = arith.addf %6, %11 : vector<6x384xf32>
    %c2 = arith.constant 2 : index
    %c0_10 = arith.constant 0 : index
    %c0_11 = arith.constant 0 : index
    %13 = vector.load %arg2[%c2, %c0_10, %c0_11] : memref<18x6x4xbf16, #tpu.memory_space<vmem>>, vector<1x6x4xbf16>
    %14 = vector.shape_cast %13 : vector<1x6x4xbf16> to vector<6x4xbf16>
    %c0_12 = arith.constant 0 : index
    %c0_13 = arith.constant 0 : index
    %c54 = arith.constant 54 : index
    %15 = vector.load %arg1[%c0_12, %c0_13, %c54] : memref<1x4x600xbf16, #tpu.memory_space<vmem>>, vector<1x4x384xbf16>
    %16 = vector.shape_cast %15 : vector<1x4x384xbf16> to vector<4x384xbf16>
    %cst_14 = arith.constant dense<0.000000e+00> : vector<6x384xf32>
    %17 = tpu.matmul %14, %16, %cst_14 {dimension_numbers = #tpu.dot_dimension_numbers<[1], [0], [0], [1], [0, 0, 1, 1], [], []>} : vector<6x4xbf16>, vector<4x384xbf16>, vector<6x384xf32> -> vector<6x384xf32>
    %18 = arith.addf %12, %17 : vector<6x384xf32>
    %c3 = arith.constant 3 : index
    %c0_15 = arith.constant 0 : index
    %c0_16 = arith.constant 0 : index
    %19 = vector.load %arg2[%c3, %c0_15, %c0_16] : memref<18x6x4xbf16, #tpu.memory_space<vmem>>, vector<1x6x4xbf16>
    %20 = vector.shape_cast %19 : vector<1x6x4xbf16> to vector<6x4xbf16>
    %c0_17 = arith.constant 0 : index
    %c0_18 = arith.constant 0 : index
    %c98 = arith.constant 98 : index
    %21 = vector.load %arg1[%c0_17, %c0_18, %c98] : memref<1x4x600xbf16, #tpu.memory_space<vmem>>, vector<1x4x384xbf16>
    %22 = vector.shape_cast %21 : vector<1x4x384xbf16> to vector<4x384xbf16>
    %cst_19 = arith.constant dense<0.000000e+00> : vector<6x384xf32>
    %23 = tpu.matmul %20, %22, %cst_19 {dimension_numbers = #tpu.dot_dimension_numbers<[1], [0], [0], [1], [0, 0, 1, 1], [], []>} : vector<6x4xbf16>, vector<4x384xbf16>, vector<6x384xf32> -> vector<6x384xf32>
    %24 = arith.addf %18, %23 : vector<6x384xf32>
    %c4 = arith.constant 4 : index
    %c0_20 = arith.constant 0 : index
    %c0_21 = arith.constant 0 : index
    %25 = vector.load %arg2[%c4, %c0_20, %c0_21] : memref<18x6x4xbf16, #tpu.memory_space<vmem>>, vector<1x6x4xbf16>
    %26 = vector.shape_cast %25 : vector<1x6x4xbf16> to vector<6x4xbf16>
    %c0_22 = arith.constant 0 : index
    %c0_23 = arith.constant 0 : index
    %c100 = arith.constant 100 : index
    %27 = vector.load %arg1[%c0_22, %c0_23, %c100] : memref<1x4x600xbf16, #tpu.memory_space<vmem>>, vector<1x4x384xbf16>
    %28 = vector.shape_cast %27 : vector<1x4x384xbf16> to vector<4x384xbf16>
    %cst_24 = arith.constant dense<0.000000e+00> : vector<6x384xf32>
    %29 = tpu.matmul %26, %28, %cst_24 {dimension_numbers = #tpu.dot_dimension_numbers<[1], [0], [0], [1], [0, 0, 1, 1], [], []>} : vector<6x4xbf16>, vector<4x384xbf16>, vector<6x384xf32> -> vector<6x384xf32>
    %30 = arith.addf %24, %29 : vector<6x384xf32>
    %c5 = arith.constant 5 : index
    %c0_25 = arith.constant 0 : index
    %c0_26 = arith.constant 0 : index
    %31 = vector.load %arg2[%c5, %c0_25, %c0_26] : memref<18x6x4xbf16, #tpu.memory_space<vmem>>, vector<1x6x4xbf16>
    %32 = vector.shape_cast %31 : vector<1x6x4xbf16> to vector<6x4xbf16>
    %c0_27 = arith.constant 0 : index
    %c0_28 = arith.constant 0 : index
    %c102 = arith.constant 102 : index
    %33 = vector.load %arg1[%c0_27, %c0_28, %c102] : memref<1x4x600xbf16, #tpu.memory_space<vmem>>, vector<1x4x384xbf16>
    %34 = vector.shape_cast %33 : vector<1x4x384xbf16> to vector<4x384xbf16>
    %cst_29 = arith.constant dense<0.000000e+00> : vector<6x384xf32>
    %35 = tpu.matmul %32, %34, %cst_29 {dimension_numbers = #tpu.dot_dimension_numbers<[1], [0], [0], [1], [0, 0, 1, 1], [], []>} : vector<6x4xbf16>, vector<4x384xbf16>, vector<6x384xf32> -> vector<6x384xf32>
    %36 = arith.addf %30, %35 : vector<6x384xf32>
    %c6 = arith.constant 6 : index
    %c0_30 = arith.constant 0 : index
    %c0_31 = arith.constant 0 : index
    %37 = vector.load %arg2[%c6, %c0_30, %c0_31] : memref<18x6x4xbf16, #tpu.memory_space<vmem>>, vector<1x6x4xbf16>
    %38 = vector.shape_cast %37 : vector<1x6x4xbf16> to vector<6x4xbf16>
    %c0_32 = arith.constant 0 : index
    %c0_33 = arith.constant 0 : index
    %c146 = arith.constant 146 : index
    %39 = vector.load %arg1[%c0_32, %c0_33, %c146] : memref<1x4x600xbf16, #tpu.memory_space<vmem>>, vector<1x4x384xbf16>
    %40 = vector.shape_cast %39 : vector<1x4x384xbf16> to vector<4x384xbf16>
    %cst_34 = arith.constant dense<0.000000e+00> : vector<6x384xf32>
    %41 = tpu.matmul %38, %40, %cst_34 {dimension_numbers = #tpu.dot_dimension_numbers<[1], [0], [0], [1], [0, 0, 1, 1], [], []>} : vector<6x4xbf16>, vector<4x384xbf16>, vector<6x384xf32> -> vector<6x384xf32>
    %42 = arith.addf %36, %41 : vector<6x384xf32>
    %c7 = arith.constant 7 : index
    %c0_35 = arith.constant 0 : index
    %c0_36 = arith.constant 0 : index
    %43 = vector.load %arg2[%c7, %c0_35, %c0_36] : memref<18x6x4xbf16, #tpu.memory_space<vmem>>, vector<1x6x4xbf16>
    %44 = vector.shape_cast %43 : vector<1x6x4xbf16> to vector<6x4xbf16>
    %c0_37 = arith.constant 0 : index
    %c0_38 = arith.constant 0 : index
    %c148 = arith.constant 148 : index
    %45 = vector.load %arg1[%c0_37, %c0_38, %c148] : memref<1x4x600xbf16, #tpu.memory_space<vmem>>, vector<1x4x384xbf16>
    %46 = vector.shape_cast %45 : vector<1x4x384xbf16> to vector<4x384xbf16>
    %cst_39 = arith.constant dense<0.000000e+00> : vector<6x384xf32>
    %47 = tpu.matmul %44, %46, %cst_39 {dimension_numbers = #tpu.dot_dimension_numbers<[1], [0], [0], [1], [0, 0, 1, 1], [], []>} : vector<6x4xbf16>, vector<4x384xbf16>, vector<6x384xf32> -> vector<6x384xf32>
    %48 = arith.addf %42, %47 : vector<6x384xf32>
    %c8 = arith.constant 8 : index
    %c0_40 = arith.constant 0 : index
    %c0_41 = arith.constant 0 : index
    %49 = vector.load %arg2[%c8, %c0_40, %c0_41] : memref<18x6x4xbf16, #tpu.memory_space<vmem>>, vector<1x6x4xbf16>
    %50 = vector.shape_cast %49 : vector<1x6x4xbf16> to vector<6x4xbf16>
    %c0_42 = arith.constant 0 : index
    %c0_43 = arith.constant 0 : index
    %c150 = arith.constant 150 : index
    %51 = vector.load %arg1[%c0_42, %c0_43, %c150] : memref<1x4x600xbf16, #tpu.memory_space<vmem>>, vector<1x4x384xbf16>
    %52 = vector.shape_cast %51 : vector<1x4x384xbf16> to vector<4x384xbf16>
    %cst_44 = arith.constant dense<0.000000e+00> : vector<6x384xf32>
    %53 = tpu.matmul %50, %52, %cst_44 {dimension_numbers = #tpu.dot_dimension_numbers<[1], [0], [0], [1], [0, 0, 1, 1], [], []>} : vector<6x4xbf16>, vector<4x384xbf16>, vector<6x384xf32> -> vector<6x384xf32>
    %54 = arith.addf %48, %53 : vector<6x384xf32>
    %c9 = arith.constant 9 : index
    %c0_45 = arith.constant 0 : index
    %c0_46 = arith.constant 0 : index
    %55 = vector.load %arg2[%c9, %c0_45, %c0_46] : memref<18x6x4xbf16, #tpu.memory_space<vmem>>, vector<1x6x4xbf16>
    %56 = vector.shape_cast %55 : vector<1x6x4xbf16> to vector<6x4xbf16>
    %c0_47 = arith.constant 0 : index
    %c0_48 = arith.constant 0 : index
    %c0_49 = arith.constant 0 : index
    %57 = vector.load %arg1[%c0_47, %c0_48, %c0_49] : memref<1x4x600xbf16, #tpu.memory_space<vmem>>, vector<1x4x384xbf16>
    %58 = vector.shape_cast %57 : vector<1x4x384xbf16> to vector<4x384xbf16>
    %cst_50 = arith.constant dense<0.000000e+00> : vector<6x384xf32>
    %59 = tpu.matmul %56, %58, %cst_50 {dimension_numbers = #tpu.dot_dimension_numbers<[1], [0], [0], [1], [0, 0, 1, 1], [], []>} : vector<6x4xbf16>, vector<4x384xbf16>, vector<6x384xf32> -> vector<6x384xf32>
    %60 = arith.addf %54, %59 : vector<6x384xf32>
    %c10 = arith.constant 10 : index
    %c0_51 = arith.constant 0 : index
    %c0_52 = arith.constant 0 : index
    %61 = vector.load %arg2[%c10, %c0_51, %c0_52] : memref<18x6x4xbf16, #tpu.memory_space<vmem>>, vector<1x6x4xbf16>
    %62 = vector.shape_cast %61 : vector<1x6x4xbf16> to vector<6x4xbf16>
    %c0_53 = arith.constant 0 : index
    %c0_54 = arith.constant 0 : index
    %c4_55 = arith.constant 4 : index
    %63 = vector.load %arg1[%c0_53, %c0_54, %c4_55] : memref<1x4x600xbf16, #tpu.memory_space<vmem>>, vector<1x4x384xbf16>
    %64 = vector.shape_cast %63 : vector<1x4x384xbf16> to vector<4x384xbf16>
    %cst_56 = arith.constant dense<0.000000e+00> : vector<6x384xf32>
    %65 = tpu.matmul %62, %64, %cst_56 {dimension_numbers = #tpu.dot_dimension_numbers<[1], [0], [0], [1], [0, 0, 1, 1], [], []>} : vector<6x4xbf16>, vector<4x384xbf16>, vector<6x384xf32> -> vector<6x384xf32>
    %66 = arith.addf %60, %65 : vector<6x384xf32>
    %c11 = arith.constant 11 : index
    %c0_57 = arith.constant 0 : index
    %c0_58 = arith.constant 0 : index
    %67 = vector.load %arg2[%c11, %c0_57, %c0_58] : memref<18x6x4xbf16, #tpu.memory_space<vmem>>, vector<1x6x4xbf16>
    %68 = vector.shape_cast %67 : vector<1x6x4xbf16> to vector<6x4xbf16>
    %c0_59 = arith.constant 0 : index
    %c0_60 = arith.constant 0 : index
    %c8_61 = arith.constant 8 : index
    %69 = vector.load %arg1[%c0_59, %c0_60, %c8_61] : memref<1x4x600xbf16, #tpu.memory_space<vmem>>, vector<1x4x384xbf16>
    %70 = vector.shape_cast %69 : vector<1x4x384xbf16> to vector<4x384xbf16>
    %cst_62 = arith.constant dense<0.000000e+00> : vector<6x384xf32>
    %71 = tpu.matmul %68, %70, %cst_62 {dimension_numbers = #tpu.dot_dimension_numbers<[1], [0], [0], [1], [0, 0, 1, 1], [], []>} : vector<6x4xbf16>, vector<4x384xbf16>, vector<6x384xf32> -> vector<6x384xf32>
    %72 = arith.addf %66, %71 : vector<6x384xf32>
    %c12 = arith.constant 12 : index
    %c0_63 = arith.constant 0 : index
    %c0_64 = arith.constant 0 : index
    %73 = vector.load %arg2[%c12, %c0_63, %c0_64] : memref<18x6x4xbf16, #tpu.memory_space<vmem>>, vector<1x6x4xbf16>
    %74 = vector.shape_cast %73 : vector<1x6x4xbf16> to vector<6x4xbf16>
    %c0_65 = arith.constant 0 : index
    %c0_66 = arith.constant 0 : index
    %c96 = arith.constant 96 : index
    %75 = vector.load %arg1[%c0_65, %c0_66, %c96] : memref<1x4x600xbf16, #tpu.memory_space<vmem>>, vector<1x4x384xbf16>
    %76 = vector.shape_cast %75 : vector<1x4x384xbf16> to vector<4x384xbf16>
    %cst_67 = arith.constant dense<0.000000e+00> : vector<6x384xf32>
    %77 = tpu.matmul %74, %76, %cst_67 {dimension_numbers = #tpu.dot_dimension_numbers<[1], [0], [0], [1], [0, 0, 1, 1], [], []>} : vector<6x4xbf16>, vector<4x384xbf16>, vector<6x384xf32> -> vector<6x384xf32>
    %78 = arith.addf %72, %77 : vector<6x384xf32>
    %c13 = arith.constant 13 : index
    %c0_68 = arith.constant 0 : index
    %c0_69 = arith.constant 0 : index
    %79 = vector.load %arg2[%c13, %c0_68, %c0_69] : memref<18x6x4xbf16, #tpu.memory_space<vmem>>, vector<1x6x4xbf16>
    %80 = vector.shape_cast %79 : vector<1x6x4xbf16> to vector<6x4xbf16>
    %c0_70 = arith.constant 0 : index
    %c0_71 = arith.constant 0 : index
    %c100_72 = arith.constant 100 : index
    %81 = vector.load %arg1[%c0_70, %c0_71, %c100_72] : memref<1x4x600xbf16, #tpu.memory_space<vmem>>, vector<1x4x384xbf16>
    %82 = vector.shape_cast %81 : vector<1x4x384xbf16> to vector<4x384xbf16>
    %cst_73 = arith.constant dense<0.000000e+00> : vector<6x384xf32>
    %83 = tpu.matmul %80, %82, %cst_73 {dimension_numbers = #tpu.dot_dimension_numbers<[1], [0], [0], [1], [0, 0, 1, 1], [], []>} : vector<6x4xbf16>, vector<4x384xbf16>, vector<6x384xf32> -> vector<6x384xf32>
    %84 = arith.addf %78, %83 : vector<6x384xf32>
    %c14 = arith.constant 14 : index
    %c0_74 = arith.constant 0 : index
    %c0_75 = arith.constant 0 : index
    %85 = vector.load %arg2[%c14, %c0_74, %c0_75] : memref<18x6x4xbf16, #tpu.memory_space<vmem>>, vector<1x6x4xbf16>
    %86 = vector.shape_cast %85 : vector<1x6x4xbf16> to vector<6x4xbf16>
    %c0_76 = arith.constant 0 : index
    %c0_77 = arith.constant 0 : index
    %c104 = arith.constant 104 : index
    %87 = vector.load %arg1[%c0_76, %c0_77, %c104] : memref<1x4x600xbf16, #tpu.memory_space<vmem>>, vector<1x4x384xbf16>
    %88 = vector.shape_cast %87 : vector<1x4x384xbf16> to vector<4x384xbf16>
    %cst_78 = arith.constant dense<0.000000e+00> : vector<6x384xf32>
    %89 = tpu.matmul %86, %88, %cst_78 {dimension_numbers = #tpu.dot_dimension_numbers<[1], [0], [0], [1], [0, 0, 1, 1], [], []>} : vector<6x4xbf16>, vector<4x384xbf16>, vector<6x384xf32> -> vector<6x384xf32>
    %90 = arith.addf %84, %89 : vector<6x384xf32>
    %c15 = arith.constant 15 : index
    %c0_79 = arith.constant 0 : index
    %c0_80 = arith.constant 0 : index
    %91 = vector.load %arg2[%c15, %c0_79, %c0_80] : memref<18x6x4xbf16, #tpu.memory_space<vmem>>, vector<1x6x4xbf16>
    %92 = vector.shape_cast %91 : vector<1x6x4xbf16> to vector<6x4xbf16>
    %c0_81 = arith.constant 0 : index
    %c0_82 = arith.constant 0 : index
    %c192 = arith.constant 192 : index
    %93 = vector.load %arg1[%c0_81, %c0_82, %c192] : memref<1x4x600xbf16, #tpu.memory_space<vmem>>, vector<1x4x384xbf16>
    %94 = vector.shape_cast %93 : vector<1x4x384xbf16> to vector<4x384xbf16>
    %cst_83 = arith.constant dense<0.000000e+00> : vector<6x384xf32>
    %95 = tpu.matmul %92, %94, %cst_83 {dimension_numbers = #tpu.dot_dimension_numbers<[1], [0], [0], [1], [0, 0, 1, 1], [], []>} : vector<6x4xbf16>, vector<4x384xbf16>, vector<6x384xf32> -> vector<6x384xf32>
    %96 = arith.addf %90, %95 : vector<6x384xf32>
    %c16 = arith.constant 16 : index
    %c0_84 = arith.constant 0 : index
    %c0_85 = arith.constant 0 : index
    %97 = vector.load %arg2[%c16, %c0_84, %c0_85] : memref<18x6x4xbf16, #tpu.memory_space<vmem>>, vector<1x6x4xbf16>
    %98 = vector.shape_cast %97 : vector<1x6x4xbf16> to vector<6x4xbf16>
    %c0_86 = arith.constant 0 : index
    %c0_87 = arith.constant 0 : index
    %c196 = arith.constant 196 : index
    %99 = vector.load %arg1[%c0_86, %c0_87, %c196] : memref<1x4x600xbf16, #tpu.memory_space<vmem>>, vector<1x4x384xbf16>
    %100 = vector.shape_cast %99 : vector<1x4x384xbf16> to vector<4x384xbf16>
    %cst_88 = arith.constant dense<0.000000e+00> : vector<6x384xf32>
    %101 = tpu.matmul %98, %100, %cst_88 {dimension_numbers = #tpu.dot_dimension_numbers<[1], [0], [0], [1], [0, 0, 1, 1], [], []>} : vector<6x4xbf16>, vector<4x384xbf16>, vector<6x384xf32> -> vector<6x384xf32>
    %102 = arith.addf %96, %101 : vector<6x384xf32>
    %c17 = arith.constant 17 : index
    %c0_89 = arith.constant 0 : index
    %c0_90 = arith.constant 0 : index
    %103 = vector.load %arg2[%c17, %c0_89, %c0_90] : memref<18x6x4xbf16, #tpu.memory_space<vmem>>, vector<1x6x4xbf16>
    %104 = vector.shape_cast %103 : vector<1x6x4xbf16> to vector<6x4xbf16>
    %c0_91 = arith.constant 0 : index
    %c0_92 = arith.constant 0 : index
    %c200 = arith.constant 200 : index
    %105 = vector.load %arg1[%c0_91, %c0_92, %c200] : memref<1x4x600xbf16, #tpu.memory_space<vmem>>, vector<1x4x384xbf16>
    %106 = vector.shape_cast %105 : vector<1x4x384xbf16> to vector<4x384xbf16>
    %cst_93 = arith.constant dense<0.000000e+00> : vector<6x384xf32>
    %107 = tpu.matmul %104, %106, %cst_93 {dimension_numbers = #tpu.dot_dimension_numbers<[1], [0], [0], [1], [0, 0, 1, 1], [], []>} : vector<6x4xbf16>, vector<4x384xbf16>, vector<6x384xf32> -> vector<6x384xf32>
    %108 = arith.addf %102, %107 : vector<6x384xf32>
    %c0_94 = arith.constant 0 : index
    %c0_95 = arith.constant 0 : index
    %109 = vector.load %arg3[%c0_94, %c0_95] : memref<6x1xf32, #tpu.memory_space<vmem>>, vector<6x1xf32>
    %110 = vector.broadcast %109 : vector<6x1xf32> to vector<6x384xf32>
    %111 = arith.addf %108, %110 : vector<6x384xf32>
    %c0_96 = arith.constant 0 : index
    %c0_97 = arith.constant 0 : index
    %c0_98 = arith.constant 0 : index
    %112 = vector.load %arg4[%c0_96, %c0_97, %c0_98] : memref<1x6x384xf32, #tpu.memory_space<vmem>>, vector<1x6x384xf32>
    %113 = vector.shape_cast %112 : vector<1x6x384xf32> to vector<6x384xf32>
    %114 = vector.shape_cast %111 : vector<6x384xf32> to vector<1x6x384xf32>
    tpu.vector_store %arg4[%c0_96, %c0_97, %c0_98], %114 {strides = array<i32>} : memref<1x6x384xf32, #tpu.memory_space<vmem>>, vector<1x6x384xf32>,
    return
  }
  func.func @transform_0(%arg0: i32) -> (i32, i32, i32) {
    %c0_i32 = arith.constant 0 : i32
    %c0_i32_0 = arith.constant 0 : i32
    %c0_i32_1 = arith.constant 0 : i32
    return %arg0, %c0_i32, %c0_i32_0 : i32, i32, i32
  }
  func.func @transform_1(%arg0: i32) -> (i32, i32, i32) {
    %c0_i32 = arith.constant 0 : i32
    %c0_i32_0 = arith.constant 0 : i32
    %c0_i32_1 = arith.constant 0 : i32
    %c0_i32_2 = arith.constant 0 : i32
    return %c0_i32, %c0_i32_0, %c0_i32_1 : i32, i32, i32
  }
  func.func @transform_2(%arg0: i32) -> (i32, i32) {
    %c0_i32 = arith.constant 0 : i32
    %c0_i32_0 = arith.constant 0 : i32
    %c0_i32_1 = arith.constant 0 : i32
    return %c0_i32, %c0_i32_0 : i32, i32
  }
  func.func @transform_3(%arg0: i32) -> (i32, i32, i32) {
    %c0_i32 = arith.constant 0 : i32
    %c0_i32_0 = arith.constant 0 : i32
    %c0_i32_1 = arith.constant 0 : i32
    return %arg0, %c0_i32, %c0_i32_0 : i32, i32, i32
  }
}

</mosaic_0001>

<llo_original>
// kernel: tpu_custom_call.1
$region0: #{tpu_custom_call.1}
  #allocation0 [shape = 'u32[]', space=smem, size = 0x4, offset = 0x4, fixed_abs, tag = 'smem constant byte address 0x4 - core index']
  #allocation1 [shape = 'u32[144,128]{1,0:T(1,128)}', space=vmem, size = 0x12000, scoped, tag = 'internal scratch']
  %s0 = inlined_call_operand.vmem [shape: bf16[2,4,600], index: 0, kind: input, shape index: {}]
  %s1 = inlined_call_operand.vmem [shape: bf16[18,6,4], index: 1, kind: input, shape index: {}]
  %s2 = inlined_call_operand.vmem [shape: f32[6,1], index: 2, kind: input, shape index: {}]
  %s3 = inlined_call_operand.vmem [shape: f32[2,6,384], index: 3, kind: output, shape index: {}]
  %s4 = sld [smem:[#allocation0]]
  $region45: #{tpu_custom_call.1} parent=0
    _
  %s6 = ssub.s32 1, %s4
  %s7 = scalar_select 0, %s6, %s4
  loop: start=0, step=1, limit=4
  $region2: #{tpu_custom_call.1} parent=0 // loop_pre_header
    _
  $region3: #{tpu_custom_call.1} parent=0 // loop_header
    %s9 = sphi 0, %s13
    %p10 = scmp.ge.s32.totalorder %s9, 4
    %s19 = sphi 0, %s21
    %s22 = sphi 0, %s19
    %s23 = sphi 0, %s22
    %s39 = sphi 0, %s23
    %s43 = sphi 0, %s43
    %s45 = sphi 0, %s43
    %s46 = sphi 0, %s45
    %s60 = sphi 0, %s46
    %s64 = sphi 0, %s64
    %s66 = sphi 0, %s64
    %s67 = sphi 0, %s66
    %s81 = sphi 0, %s67
    %s87 = sphi 0, %s89
    %s90 = sphi 0, %s87
    %s91 = sphi 0, %s90
    %s107 = sphi 0, %s91
  $region4: #{tpu_custom_call.1} parent=0 // loop_header_branch
    %12 = sbr.rel (%p10) target = $region8
  $region5: #{tpu_custom_call.1} parent=0 // loop_body
    %s14 = ssub.s32 %s9, 1
    %s15 = ssub.s32 %s9, 2
    %s16 = sadd.s32 %s9, 1
    %s17 = ssub.s32 %s9, %s16
    %p18 = scmp.eq.s32.totalorder %s17, 0
    %s20 = sadd.s32 %s19, 1
    %s21 = scalar_select %p18, %s19, %s20
    %p24 = pneg %p18
    %p25 = scmp.eq.s32.totalorder %s9, 1
    %p26 = por %p24, %p25
    %p27 = scmp.ne.s32.totalorder %s19, %s22
    %p28 = scmp.eq.s32.totalorder %s9, 0
    %p29 = por %p27, %p28
    %p30 = scmp.ne.s32.totalorder %s19, %s22
    %p31 = scmp.eq.s32.totalorder %s14, 1
    %p32 = por %p30, %p31
    %p33 = scmp.ne.s32.totalorder %s22, %s23
    %p34 = scmp.eq.s32.totalorder %s14, 0
    %p35 = por %p33, %p34
    %p36 = scmp.ne.s32.totalorder %s22, %s23
    %p37 = scmp.eq.s32.totalorder %s15, 1
    %p38 = por %p36, %p37
    %p40 = scmp.ne.s32.totalorder %s23, %s39
    %p41 = scmp.eq.s32.totalorder %s15, 0
    %p42 = por %p40, %p41
    %s44 = sadd.s32 %s43, 1
    %p47 = scmp.eq.s32.totalorder %s9, 1
    %p48 = scmp.ne.s32.totalorder %s43, %s45
    %p49 = scmp.eq.s32.totalorder %s9, 0
    %p50 = por %p48, %p49
    %p51 = scmp.ne.s32.totalorder %s43, %s45
    %p52 = scmp.eq.s32.totalorder %s14, 1
    %p53 = por %p51, %p52
    %p54 = scmp.ne.s32.totalorder %s45, %s46
    %p55 = scmp.eq.s32.totalorder %s14, 0
    %p56 = por %p54, %p55
    %p57 = scmp.ne.s32.totalorder %s45, %s46
    %p58 = scmp.eq.s32.totalorder %s15, 1
    %p59 = por %p57, %p58
    %p61 = scmp.ne.s32.totalorder %s46, %s60
    %p62 = scmp.eq.s32.totalorder %s15, 0
    %p63 = por %p61, %p62
    %s65 = sadd.s32 %s64, 1
    %p68 = scmp.eq.s32.totalorder %s9, 1
    %p69 = scmp.ne.s32.totalorder %s64, %s66
    %p70 = scmp.eq.s32.totalorder %s9, 0
    %p71 = por %p69, %p70
    %p72 = scmp.ne.s32.totalorder %s64, %s66
    %p73 = scmp.eq.s32.totalorder %s14, 1
    %p74 = por %p72, %p73
    %p75 = scmp.ne.s32.totalorder %s66, %s67
    %p76 = scmp.eq.s32.totalorder %s14, 0
    %p77 = por %p75, %p76
    %p78 = scmp.ne.s32.totalorder %s66, %s67
    %p79 = scmp.eq.s32.totalorder %s15, 1
    %p80 = por %p78, %p79
    %p82 = scmp.ne.s32.totalorder %s67, %s81
    %p83 = scmp.eq.s32.totalorder %s15, 0
    %p84 = por %p82, %p83
    %s85 = ssub.s32 %s9, %s16
    %p86 = scmp.eq.s32.totalorder %s85, 0
    %s88 = sadd.s32 %s87, 1
    %s89 = scalar_select %p86, %s87, %s88
    %p92 = pneg %p86
    %p93 = scmp.eq.s32.totalorder %s9, 1
    %p94 = por %p92, %p93
    %p95 = scmp.ne.s32.totalorder %s87, %s90
    %p96 = scmp.eq.s32.totalorder %s9, 0
    %p97 = por %p95, %p96
    %p98 = scmp.ne.s32.totalorder %s87, %s90
    %p99 = scmp.eq.s32.totalorder %s14, 1
    %p100 = por %p98, %p99
    %p101 = scmp.ne.s32.totalorder %s90, %s91
    %p102 = scmp.eq.s32.totalorder %s14, 0
    %p103 = por %p101, %p102
    %p104 = scmp.ne.s32.totalorder %s90, %s91
    %p105 = scmp.eq.s32.totalorder %s15, 1
    %p106 = por %p104, %p105
    %p108 = scmp.ne.s32.totalorder %s91, %s107
    %p109 = scmp.eq.s32.totalorder %s15, 0
    %p110 = por %p108, %p109
    %p111 = scmp.le.s32.totalorder 1, %s9
    %p112 = scmp.lt.s32.totalorder %s9, 3
    %p113 = pnand %p111, %p112
    %p114 = pneg %p113
    // Predicated region
    $region9: #{tpu_custom_call.1} parent=5 // pred_check
      _
    $region10: #{tpu_custom_call.1} parent=5 // pred_check_branch
      %116 = sbr.rel (%p113) target = $region12
    $region11: #{tpu_custom_call.1} parent=5 // pred_region
      %s117 = ssub.s32 %s9, 1
      // Predicated region
      $region13: #{tpu_custom_call.1} parent=11 // pred_check
        %p118 = pneg %p56
      $region14: #{tpu_custom_call.1} parent=11 // pred_check_branch
        %120 = sbr.rel (%p118) target = $region16
      $region15: #{tpu_custom_call.1} parent=11 // pred_region
        _
      $region16: #{tpu_custom_call.1} parent=11 // pred_fallthru
        _
      // Predicated region
      $region17: #{tpu_custom_call.1} parent=11 // pred_check
        %p121 = pneg %p77
      $region18: #{tpu_custom_call.1} parent=11 // pred_check_branch
        %123 = sbr.rel (%p121) target = $region20
      $region19: #{tpu_custom_call.1} parent=11 // pred_region
        _
      $region20: #{tpu_custom_call.1} parent=11 // pred_fallthru
        _
    $region12: #{tpu_custom_call.1} parent=5 // pred_fallthru
      _
    %p124 = scmp.lt.s32.totalorder %s9, 2
    // Predicated region
    $region21: #{tpu_custom_call.1} parent=5 // pred_check
      %p125 = pneg %p124
    $region22: #{tpu_custom_call.1} parent=5 // pred_check_branch
      %127 = sbr.rel (%p125) target = $region24
    $region23: #{tpu_custom_call.1} parent=5 // pred_region
      // Predicated region
      $region25: #{tpu_custom_call.1} parent=23 // pred_check
        %p128 = pneg %p29
      $region26: #{tpu_custom_call.1} parent=23 // pred_check_branch
        %130 = sbr.rel (%p128) target = $region28
      $region27: #{tpu_custom_call.1} parent=23 // pred_region
        %p131 = scmp.lt.s32.totalorder %s9, 1
        %s132 = scalar_select %p131, %s9, 1
        %s133 = smul.addr %s132, 5
        %s134 = smul.addr %s133, 2
        %s135 = scalar_lea.vmem %s0, %s134
      $region28: #{tpu_custom_call.1} parent=23 // pred_fallthru
        _
    $region24: #{tpu_custom_call.1} parent=5 // pred_fallthru
      _
    %p136 = scmp.le.s32.totalorder 1, %s9
    %p137 = scmp.lt.s32.totalorder %s9, 3
    %p138 = pnand %p136, %p137
    %p139 = pneg %p138
    // Predicated region
    $region29: #{tpu_custom_call.1} parent=5 // pred_check
      _
    $region30: #{tpu_custom_call.1} parent=5 // pred_check_branch
      %141 = sbr.rel (%p138) target = $region32
    $region31: #{tpu_custom_call.1} parent=5 // pred_region
      %s142 = ssub.s32 %s9, 1
      %p143 = scmp.lt.s32.totalorder %s14, 1
      %s144 = scalar_select %p143, %s14, 1
      %s145 = smul.addr %s144, 5
      %s146 = smul.addr %s145, 2
      %s147 = scalar_lea.vmem %s0, %s146
      %p148 = pneg %p35
      %p149 = pneg %p32
      %p150 = pneg %p56
      %p151 = pneg %p53
      %p152 = pneg %p77
      %p153 = pneg %p74
      %p154 = pneg %p103
      %p155 = pneg %p100
      %p156 = scmp.lt.s32.totalorder %s14, 1
      %s157 = scalar_select %p156, %s14, 1
      %s158 = smul.addr %s157, 3
      %s159 = smul.addr %s158, 8
      %s160 = scalar_lea.vmem %s3, %s159
      %p161 = scmp.lt.s32.totalorder %s14, 1
      %s162 = scalar_select %p161, %s14, 1
      %s163 = smul.addr %s162, 5
      %s164 = smul.addr %s163, 2
      %s165 = scalar_lea.vmem %s0, %s164
      %p166 = scmp.lt.s32.totalorder %s14, 1
      %s167 = scalar_select %p166, %s14, 1
      %s168 = smul.addr %s167, 3
      %s169 = smul.addr %s168, 8
      %s170 = scalar_lea.vmem %s3, %s169
      %v172 = vld [vmem:[%s1] sm:$0x7]
      %v173 = vld [vmem:[%s165] sm:$0xff]
      %s174 = scalar_lea.vmem %s1, 4
      %v175 = vld [vmem:[%s174] sm:$0x7]
      %v177 = vcombine.high %v173, %v173
      %v179 = vunpack.c.l.s4 1983009808
      %v180 = vunpack.c.0.s8 %v179
      %v181 = vlaneseq
      %v182 = vshrl.u32 %v181, 7
      %v183 = vsub.s32 %v180, %v182
      %v184 = vrot.slane %v173, %v183
      %v186 = vunpack.c.l.s4 1983009808
      %v187 = vunpack.c.0.s8 %v186
      %v188 = vlaneseq
      %v189 = vshrl.u32 %v188, 7
      %v190 = vsub.s32 %v187, %v189
      %v191 = vrot.slane %v177, %v190
      %v192 = vcombine.high %v184, %v184
      %v193 = vcombine.high %v191, %v191
      %194 = vrot.lane.b32.xlu0 %v184, 76
      %v195 = vpop.permute.xlu0 %194
      %196 = vrot.lane.b32.xlu0 %v192, 76
      %v197 = vpop.permute.xlu0 %196
      %198 = vrot.lane.b32.xlu0 %v191, 76
      %v199 = vpop.permute.xlu0 %198
      %200 = vrot.lane.b32.xlu0 %v193, 76
      %v201 = vpop.permute.xlu0 %200
      %vm202 = vcmask 621568
      %v203 = vsel %vm202, %v195, %v197
      %v204 = vsel %vm202, %v197, %v199
      %v205 = vsel %vm202, %v199, %v201
      %vm206 = vcmask 31744
      %v208 = vsel %vm206, %v175, 0
      %vm210 = vcmask 1041408
      %v212 = vsel %vm210, %v203, 0
      %v215 = vsel %vm210, %v204, 0
      %v218 = vsel %vm210, %v205, 0
      %220 = vmatprep.subr.bf16.mxu0 0
      %221 = vmatpush1.bf16.msra.mxu0 0
      %222 = vmatprep.subr.bf16.mxu0 0
      %223 = vmatpush1.bf16.msra.mxu0 0
      %224 = vmatprep.subr.bf16.mxu0 0
      %225 = vmatpush1.bf16.msra.mxu0 0
      %226 = vmatprep.subr.bf16.mxu0 0
      %227 = vmatpush1.bf16.msra.mxu0 0
      %228 = vmatprep.subr.bf16.mxu0 0
      %229 = vmatpush1.bf16.msra.mxu0 0
      %230 = vmatprep.subr.bf16.mxu0 0
      %231 = vmatpush1.bf16.msra.mxu0 0
      %232 = vmatprep.subr.bf16.mxu0 0
      %233 = vmatpush1.bf16.msra.mxu0 0
      %234 = vmatprep.subr.bf16.mxu0 %v215
      %235 = vmatpush1.bf16.msra.mxu0 %v212
      %236 = vmatprep.subr.bf16.mxu0 0
      %237 = vmatpush2.bf16.msra.mxu0 0
      %238 = vmatprep.subr.bf16.mxu0 0
      %239 = vmatpush2.bf16.msra.mxu0 0
      %240 = vmatprep.subr.bf16.mxu0 0
      %241 = vmatpush2.bf16.msra.mxu0 0
      %242 = vmatprep.subr.bf16.mxu0 0
      %243 = vmatpush2.bf16.msra.mxu0 0
      %244 = vmatprep.subr.bf16.mxu0 0
      %245 = vmatpush2.bf16.msra.mxu0 0
      %246 = vmatprep.subr.bf16.mxu0 0
      %247 = vmatpush2.bf16.msra.mxu0 0
      %248 = vmatprep.subr.bf16.mxu0 0
      %249 = vmatpush2.bf16.msra.mxu0 0
      %250 = vmatprep.subr.bf16.mxu0 0
      %251 = vmatpush2.bf16.msra.mxu0 0
      %252 = vmatprep.mubr.bf16.mxu0 0
      %253 = vmatmul.mubr.bf16.gmra.mxu0 %v208
      %v254 = vpop.f32.mrf.mxu0
      %v255 = vadd.f32 0.0, %v254
      %v256 = vpop.f32.mrf.mxu0
      %v257 = vadd.f32 0.0, %v256
      %v258 = vpop.f32.mrf.mxu0
      %v259 = vpop.f32.mrf.mxu0
      %260 = vdwg.mxu0
      %261 = vmatprep.subr.bf16.mxu0 0
      %262 = vmatpush1.bf16.msra.mxu0 0
      %263 = vmatprep.subr.bf16.mxu0 0
      %264 = vmatpush1.bf16.msra.mxu0 0
      %265 = vmatprep.subr.bf16.mxu0 0
      %266 = vmatpush1.bf16.msra.mxu0 0
      %267 = vmatprep.subr.bf16.mxu0 0
      %268 = vmatpush1.bf16.msra.mxu0 0
      %269 = vmatprep.subr.bf16.mxu0 0
      %270 = vmatpush1.bf16.msra.mxu0 0
      %271 = vmatprep.subr.bf16.mxu0 0
      %272 = vmatpush1.bf16.msra.mxu0 0
      %273 = vmatprep.subr.bf16.mxu0 0
      %274 = vmatpush1.bf16.msra.mxu0 0
      %275 = vmatprep.subr.bf16.mxu0 0
      %276 = vmatpush1.bf16.msra.mxu0 %v218
      %277 = vmatprep.subr.bf16.mxu0 0
      %278 = vmatpush2.bf16.msra.mxu0 0
      %279 = vmatprep.subr.bf16.mxu0 0
      %280 = vmatpush2.bf16.msra.mxu0 0
      %281 = vmatprep.subr.bf16.mxu0 0
      %282 = vmatpush2.bf16.msra.mxu0 0
      %283 = vmatprep.subr.bf16.mxu0 0
      %284 = vmatpush2.bf16.msra.mxu0 0
      %285 = vmatprep.subr.bf16.mxu0 0
      %286 = vmatpush2.bf16.msra.mxu0 0
      %287 = vmatprep.subr.bf16.mxu0 0
      %288 = vmatpush2.bf16.msra.mxu0 0
      %289 = vmatprep.subr.bf16.mxu0 0
      %290 = vmatpush2.bf16.msra.mxu0 0
      %291 = vmatprep.subr.bf16.mxu0 0
      %292 = vmatpush2.bf16.msra.mxu0 0
      %293 = vmatprep.mubr.bf16.mxu0 0
      %294 = vmatmul.mubr.bf16.gmra.mxu0 %v208
      %v295 = vpop.f32.mrf.mxu0
      %v296 = vadd.f32 0.0, %v295
      %v297 = vpop.f32.mrf.mxu0
      %v298 = vpop.f32.mrf.mxu0
      %v299 = vpop.f32.mrf.mxu0
      %300 = vdwg.mxu0
      %301 = vrot.lane.b32.xlu0 %v184, 78
      %v302 = vpop.permute.xlu0 %301
      %303 = vrot.lane.b32.xlu0 %v192, 78
      %v304 = vpop.permute.xlu0 %303
      %305 = vrot.lane.b32.xlu0 %v191, 78
      %v306 = vpop.permute.xlu0 %305
      %307 = vrot.lane.b32.xlu0 %v193, 78
      %v308 = vpop.permute.xlu0 %307
      %vm309 = vcmask 637952
      %v310 = vsel %vm309, %v302, %v304
      %v311 = vsel %vm309, %v304, %v306
      %v312 = vsel %vm309, %v306, %v308
      %v314 = vsel %vm206, %v172, 0
      %v317 = vsel %vm210, %v310, 0
      %v320 = vsel %vm210, %v311, 0
      %v323 = vsel %vm210, %v312, 0
      %325 = vmatprep.subr.bf16.mxu0 0
      %326 = vmatpush1.bf16.msra.mxu0 0
      %327 = vmatprep.subr.bf16.mxu0 0
      %328 = vmatpush1.bf16.msra.mxu0 0
      %329 = vmatprep.subr.bf16.mxu0 0
      %330 = vmatpush1.bf16.msra.mxu0 0
      %331 = vmatprep.subr.bf16.mxu0 0
      %332 = vmatpush1.bf16.msra.mxu0 0
      %333 = vmatprep.subr.bf16.mxu0 0
      %334 = vmatpush1.bf16.msra.mxu0 0
      %335 = vmatprep.subr.bf16.mxu0 0
      %336 = vmatpush1.bf16.msra.mxu0 0
      %337 = vmatprep.subr.bf16.mxu0 0
      %338 = vmatpush1.bf16.msra.mxu0 0
      %339 = vmatprep.subr.bf16.mxu0 %v320
      %340 = vmatpush1.bf16.msra.mxu0 %v317
      %341 = vmatprep.subr.bf16.mxu0 0
      %342 = vmatpush2.bf16.msra.mxu0 0
      %343 = vmatprep.subr.bf16.mxu0 0
      %344 = vmatpush2.bf16.msra.mxu0 0
      %345 = vmatprep.subr.bf16.mxu0 0
      %346 = vmatpush2.bf16.msra.mxu0 0
      %347 = vmatprep.subr.bf16.mxu0 0
      %348 = vmatpush2.bf16.msra.mxu0 0
      %349 = vmatprep.subr.bf16.mxu0 0
      %350 = vmatpush2.bf16.msra.mxu0 0
      %351 = vmatprep.subr.bf16.mxu0 0
      %352 = vmatpush2.bf16.msra.mxu0 0
      %353 = vmatprep.subr.bf16.mxu0 0
      %354 = vmatpush2.bf16.msra.mxu0 0
      %355 = vmatprep.subr.bf16.mxu0 0
      %356 = vmatpush2.bf16.msra.mxu0 0
      %357 = vmatprep.mubr.bf16.mxu0 0
      %358 = vmatmul.mubr.bf16.gmra.mxu0 %v314
      %v359 = vpop.f32.mrf.mxu0
      %v360 = vadd.f32 %v255, %v359
      %v361 = vpop.f32.mrf.mxu0
      %v362 = vadd.f32 %v257, %v361
      %v363 = vpop.f32.mrf.mxu0
      %v364 = vpop.f32.mrf.mxu0
      %365 = vdwg.mxu0
      %366 = vmatprep.subr.bf16.mxu0 0
      %367 = vmatpush1.bf16.msra.mxu0 0
      %368 = vmatprep.subr.bf16.mxu0 0
      %369 = vmatpush1.bf16.msra.mxu0 0
      %370 = vmatprep.subr.bf16.mxu0 0
      %371 = vmatpush1.bf16.msra.mxu0 0
      %372 = vmatprep.subr.bf16.mxu0 0
      %373 = vmatpush1.bf16.msra.mxu0 0
      %374 = vmatprep.subr.bf16.mxu0 0
      %375 = vmatpush1.bf16.msra.mxu0 0
      %376 = vmatprep.subr.bf16.mxu0 0
      %377 = vmatpush1.bf16.msra.mxu0 0
      %378 = vmatprep.subr.bf16.mxu0 0
      %379 = vmatpush1.bf16.msra.mxu0 0
      %380 = vmatprep.subr.bf16.mxu0 0
      %381 = vmatpush1.bf16.msra.mxu0 %v323
      %382 = vmatprep.subr.bf16.mxu0 0
      %383 = vmatpush2.bf16.msra.mxu0 0
      %384 = vmatprep.subr.bf16.mxu0 0
      %385 = vmatpush2.bf16.msra.mxu0 0
      %386 = vmatprep.subr.bf16.mxu0 0
      %387 = vmatpush2.bf16.msra.mxu0 0
      %388 = vmatprep.subr.bf16.mxu0 0
      %389 = vmatpush2.bf16.msra.mxu0 0
      %390 = vmatprep.subr.bf16.mxu0 0
      %391 = vmatpush2.bf16.msra.mxu0 0
      %392 = vmatprep.subr.bf16.mxu0 0
      %393 = vmatpush2.bf16.msra.mxu0 0
      %394 = vmatprep.subr.bf16.mxu0 0
      %395 = vmatpush2.bf16.msra.mxu0 0
      %396 = vmatprep.subr.bf16.mxu0 0
      %397 = vmatpush2.bf16.msra.mxu0 0
      %398 = vmatprep.mubr.bf16.mxu0 0
      %399 = vmatmul.mubr.bf16.gmra.mxu0 %v314
      %v400 = vpop.f32.mrf.mxu0
      %v401 = vadd.f32 %v296, %v400
      %v402 = vpop.f32.mrf.mxu0
      %v403 = vpop.f32.mrf.mxu0
      %v404 = vpop.f32.mrf.mxu0
      %405 = vdwg.mxu0
      %s406 = scalar_lea.vmem %s1, 8
      %v407 = vld [vmem:[%s406] sm:$0x7]
      %v408 = vld [vmem:[%s165] sm:$0xff]
      %v410 = vcombine.high %v408, %v408
      %v412 = vunpack.c.l.s4 1983009808
      %v413 = vunpack.c.0.s8 %v412
      %v414 = vlaneseq
      %v415 = vshrl.u32 %v414, 7
      %v416 = vsub.s32 %v413, %v415
      %v417 = vrot.slane %v408, %v416
      %v419 = vunpack.c.l.s4 1983009808
      %v420 = vunpack.c.0.s8 %v419
      %v421 = vlaneseq
      %v422 = vshrl.u32 %v421, 7
      %v423 = vsub.s32 %v420, %v422
      %v424 = vrot.slane %v410, %v423
      %v425 = vcombine.high %v417, %v417
      %v426 = vcombine.high %v424, %v424
      %427 = vrot.lane.b32.xlu0 %v417, 74
      %v428 = vpop.permute.xlu0 %427
      %429 = vrot.lane.b32.xlu0 %v425, 74
      %v430 = vpop.permute.xlu0 %429
      %431 = vrot.lane.b32.xlu0 %v424, 74
      %v432 = vpop.permute.xlu0 %431
      %433 = vrot.lane.b32.xlu0 %v426, 74
      %v434 = vpop.permute.xlu0 %433
      %vm435 = vcmask 605184
      %v436 = vsel %vm435, %v428, %v430
      %v437 = vsel %vm435, %v430, %v432
      %v438 = vsel %vm435, %v432, %v434
      %v440 = vsel %vm206, %v407, 0
      %v443 = vsel %vm210, %v436, 0
      %v446 = vsel %vm210, %v437, 0
      %v449 = vsel %vm210, %v438, 0
      %451 = vmatprep.subr.bf16.mxu0 0
      %452 = vmatpush1.bf16.msra.mxu0 0
      %453 = vmatprep.subr.bf16.mxu0 0
      %454 = vmatpush1.bf16.msra.mxu0 0
      %455 = vmatprep.subr.bf16.mxu0 0
      %456 = vmatpush1.bf16.msra.mxu0 0
      %457 = vmatprep.subr.bf16.mxu0 0
      %458 = vmatpush1.bf16.msra.mxu0 0
      %459 = vmatprep.subr.bf16.mxu0 0
      %460 = vmatpush1.bf16.msra.mxu0 0
      %461 = vmatprep.subr.bf16.mxu0 0
      %462 = vmatpush1.bf16.msra.mxu0 0
      %463 = vmatprep.subr.bf16.mxu0 0
      %464 = vmatpush1.bf16.msra.mxu0 0
      %465 = vmatprep.subr.bf16.mxu0 %v446
      %466 = vmatpush1.bf16.msra.mxu0 %v443
      %467 = vmatprep.subr.bf16.mxu0 0
      %468 = vmatpush2.bf16.msra.mxu0 0
      %469 = vmatprep.subr.bf16.mxu0 0
      %470 = vmatpush2.bf16.msra.mxu0 0
      %471 = vmatprep.subr.bf16.mxu0 0
      %472 = vmatpush2.bf16.msra.mxu0 0
      %473 = vmatprep.subr.bf16.mxu0 0
      %474 = vmatpush2.bf16.msra.mxu0 0
      %475 = vmatprep.subr.bf16.mxu0 0
      %476 = vmatpush2.bf16.msra.mxu0 0
      %477 = vmatprep.subr.bf16.mxu0 0
      %478 = vmatpush2.bf16.msra.mxu0 0
      %479 = vmatprep.subr.bf16.mxu0 0
      %480 = vmatpush2.bf16.msra.mxu0 0
      %481 = vmatprep.subr.bf16.mxu0 0
      %482 = vmatpush2.bf16.msra.mxu0 0
      %483 = vmatprep.mubr.bf16.mxu0 0
      %484 = vmatmul.mubr.bf16.gmra.mxu0 %v440
      %v485 = vpop.f32.mrf.mxu0
      %v486 = vadd.f32 0.0, %v485
      %v487 = vpop.f32.mrf.mxu0
      %v488 = vadd.f32 0.0, %v487
      %v489 = vpop.f32.mrf.mxu0
      %v490 = vpop.f32.mrf.mxu0
      %491 = vdwg.mxu0
      %492 = vmatprep.subr.bf16.mxu0 0
      %493 = vmatpush1.bf16.msra.mxu0 0
      %494 = vmatprep.subr.bf16.mxu0 0
      %495 = vmatpush1.bf16.msra.mxu0 0
      %496 = vmatprep.subr.bf16.mxu0 0
      %497 = vmatpush1.bf16.msra.mxu0 0
      %498 = vmatprep.subr.bf16.mxu0 0
      %499 = vmatpush1.bf16.msra.mxu0 0
      %500 = vmatprep.subr.bf16.mxu0 0
      %501 = vmatpush1.bf16.msra.mxu0 0
      %502 = vmatprep.subr.bf16.mxu0 0
      %503 = vmatpush1.bf16.msra.mxu0 0
      %504 = vmatprep.subr.bf16.mxu0 0
      %505 = vmatpush1.bf16.msra.mxu0 0
      %506 = vmatprep.subr.bf16.mxu0 0
      %507 = vmatpush1.bf16.msra.mxu0 %v449
      %508 = vmatprep.subr.bf16.mxu0 0
      %509 = vmatpush2.bf16.msra.mxu0 0
      %510 = vmatprep.subr.bf16.mxu0 0
      %511 = vmatpush2.bf16.msra.mxu0 0
      %512 = vmatprep.subr.bf16.mxu0 0
      %513 = vmatpush2.bf16.msra.mxu0 0
      %514 = vmatprep.subr.bf16.mxu0 0
      %515 = vmatpush2.bf16.msra.mxu0 0
      %516 = vmatprep.subr.bf16.mxu0 0
      %517 = vmatpush2.bf16.msra.mxu0 0
      %518 = vmatprep.subr.bf16.mxu0 0
      %519 = vmatpush2.bf16.msra.mxu0 0
      %520 = vmatprep.subr.bf16.mxu0 0
      %521 = vmatpush2.bf16.msra.mxu0 0
      %522 = vmatprep.subr.bf16.mxu0 0
      %523 = vmatpush2.bf16.msra.mxu0 0
      %524 = vmatprep.mubr.bf16.mxu0 0
      %525 = vmatmul.mubr.bf16.gmra.mxu0 %v440
      %v526 = vpop.f32.mrf.mxu0
      %v527 = vadd.f32 0.0, %v526
      %v528 = vpop.f32.mrf.mxu0
      %v529 = vpop.f32.mrf.mxu0
      %v530 = vpop.f32.mrf.mxu0
      %531 = vdwg.mxu0
      %v532 = vadd.f32 %v360, %v486
      %v533 = vadd.f32 %v362, %v488
      %v534 = vadd.f32 %v401, %v527
      %s535 = scalar_lea.vmem %s1, 12
      %v536 = vld [vmem:[%s535] sm:$0x7]
      %v537 = vld [vmem:[%s165] sm:$0xff]
      %v539 = vcombine.high %v537, %v537
      %v541 = vunpack.c.l.s4 1983009808
      %v542 = vunpack.c.0.s8 %v541
      %v543 = vlaneseq
      %v544 = vshrl.u32 %v543, 7
      %v545 = vsub.s32 %v542, %v544
      %v546 = vrot.slane %v537, %v545
      %v548 = vunpack.c.l.s4 1983009808
      %v549 = vunpack.c.0.s8 %v548
      %v550 = vlaneseq
      %v551 = vshrl.u32 %v550, 7
      %v552 = vsub.s32 %v549, %v551
      %v553 = vrot.slane %v539, %v552
      %v554 = vcombine.high %v546, %v546
      %v555 = vcombine.high %v553, %v553
      %556 = vrot.lane.b32.xlu0 %v546, 30
      %v557 = vpop.permute.xlu0 %556
      %558 = vrot.lane.b32.xlu0 %v554, 30
      %v559 = vpop.permute.xlu0 %558
      %560 = vrot.lane.b32.xlu0 %v553, 30
      %v561 = vpop.permute.xlu0 %560
      %562 = vrot.lane.b32.xlu0 %v555, 30
      %v563 = vpop.permute.xlu0 %562
      %vm564 = vcmask 244736
      %v565 = vsel %vm564, %v557, %v559
      %v566 = vsel %vm564, %v559, %v561
      %v567 = vsel %vm564, %v561, %v563
      %v569 = vsel %vm206, %v536, 0
      %v572 = vsel %vm210, %v565, 0
      %v575 = vsel %vm210, %v566, 0
      %v578 = vsel %vm210, %v567, 0
      %580 = vmatprep.subr.bf16.mxu0 0
      %581 = vmatpush1.bf16.msra.mxu0 0
      %582 = vmatprep.subr.bf16.mxu0 0
      %583 = vmatpush1.bf16.msra.mxu0 0
      %584 = vmatprep.subr.bf16.mxu0 0
      %585 = vmatpush1.bf16.msra.mxu0 0
      %586 = vmatprep.subr.bf16.mxu0 0
      %587 = vmatpush1.bf16.msra.mxu0 0
      %588 = vmatprep.subr.bf16.mxu0 0
      %589 = vmatpush1.bf16.msra.mxu0 0
      %590 = vmatprep.subr.bf16.mxu0 0
      %591 = vmatpush1.bf16.msra.mxu0 0
      %592 = vmatprep.subr.bf16.mxu0 0
      %593 = vmatpush1.bf16.msra.mxu0 0
      %594 = vmatprep.subr.bf16.mxu0 %v575
      %595 = vmatpush1.bf16.msra.mxu0 %v572
      %596 = vmatprep.subr.bf16.mxu0 0
      %597 = vmatpush2.bf16.msra.mxu0 0
      %598 = vmatprep.subr.bf16.mxu0 0
      %599 = vmatpush2.bf16.msra.mxu0 0
      %600 = vmatprep.subr.bf16.mxu0 0
      %601 = vmatpush2.bf16.msra.mxu0 0
      %602 = vmatprep.subr.bf16.mxu0 0
      %603 = vmatpush2.bf16.msra.mxu0 0
      %604 = vmatprep.subr.bf16.mxu0 0
      %605 = vmatpush2.bf16.msra.mxu0 0
      %606 = vmatprep.subr.bf16.mxu0 0
      %607 = vmatpush2.bf16.msra.mxu0 0
      %608 = vmatprep.subr.bf16.mxu0 0
      %609 = vmatpush2.bf16.msra.mxu0 0
      %610 = vmatprep.subr.bf16.mxu0 0
      %611 = vmatpush2.bf16.msra.mxu0 0
      %612 = vmatprep.mubr.bf16.mxu0 0
      %613 = vmatmul.mubr.bf16.gmra.mxu0 %v569
      %v614 = vpop.f32.mrf.mxu0
      %v615 = vadd.f32 0.0, %v614
      %v616 = vpop.f32.mrf.mxu0
      %v617 = vadd.f32 0.0, %v616
      %v618 = vpop.f32.mrf.mxu0
      %v619 = vpop.f32.mrf.mxu0
      %620 = vdwg.mxu0
      %621 = vmatprep.subr.bf16.mxu0 0
      %622 = vmatpush1.bf16.msra.mxu0 0
      %623 = vmatprep.subr.bf16.mxu0 0
      %624 = vmatpush1.bf16.msra.mxu0 0
      %625 = vmatprep.subr.bf16.mxu0 0
      %626 = vmatpush1.bf16.msra.mxu0 0
      %627 = vmatprep.subr.bf16.mxu0 0
      %628 = vmatpush1.bf16.msra.mxu0 0
      %629 = vmatprep.subr.bf16.mxu0 0
      %630 = vmatpush1.bf16.msra.mxu0 0
      %631 = vmatprep.subr.bf16.mxu0 0
      %632 = vmatpush1.bf16.msra.mxu0 0
      %633 = vmatprep.subr.bf16.mxu0 0
      %634 = vmatpush1.bf16.msra.mxu0 0
      %635 = vmatprep.subr.bf16.mxu0 0
      %636 = vmatpush1.bf16.msra.mxu0 %v578
      %637 = vmatprep.subr.bf16.mxu0 0
      %638 = vmatpush2.bf16.msra.mxu0 0
      %639 = vmatprep.subr.bf16.mxu0 0
      %640 = vmatpush2.bf16.msra.mxu0 0
      %641 = vmatprep.subr.bf16.mxu0 0
      %642 = vmatpush2.bf16.msra.mxu0 0
      %643 = vmatprep.subr.bf16.mxu0 0
      %644 = vmatpush2.bf16.msra.mxu0 0
      %645 = vmatprep.subr.bf16.mxu0 0
      %646 = vmatpush2.bf16.msra.mxu0 0
      %647 = vmatprep.subr.bf16.mxu0 0
      %648 = vmatpush2.bf16.msra.mxu0 0
      %649 = vmatprep.subr.bf16.mxu0 0
      %650 = vmatpush2.bf16.msra.mxu0 0
      %651 = vmatprep.subr.bf16.mxu0 0
      %652 = vmatpush2.bf16.msra.mxu0 0
      %653 = vmatprep.mubr.bf16.mxu0 0
      %654 = vmatmul.mubr.bf16.gmra.mxu0 %v569
      %v655 = vpop.f32.mrf.mxu0
      %v656 = vadd.f32 0.0, %v655
      %v657 = vpop.f32.mrf.mxu0
      %v658 = vpop.f32.mrf.mxu0
      %v659 = vpop.f32.mrf.mxu0
      %660 = vdwg.mxu0
      %v661 = vadd.f32 %v532, %v615
      %v662 = vadd.f32 %v533, %v617
      %v663 = vadd.f32 %v534, %v656
      %s664 = scalar_lea.vmem %s1, 16
      %v665 = vld [vmem:[%s664] sm:$0x7]
      %v666 = vld [vmem:[%s165] sm:$0xff]
      %v668 = vcombine.high %v666, %v666
      %v670 = vunpack.c.l.s4 1983009808
      %v671 = vunpack.c.0.s8 %v670
      %v672 = vlaneseq
      %v673 = vshrl.u32 %v672, 7
      %v674 = vsub.s32 %v671, %v673
      %v675 = vrot.slane %v666, %v674
      %v677 = vunpack.c.l.s4 1983009808
      %v678 = vunpack.c.0.s8 %v677
      %v679 = vlaneseq
      %v680 = vshrl.u32 %v679, 7
      %v681 = vsub.s32 %v678, %v680
      %v682 = vrot.slane %v668, %v681
      %v683 = vcombine.high %v675, %v675
      %v684 = vcombine.high %v682, %v682
      %685 = vrot.lane.b32.xlu0 %v675, 28
      %v686 = vpop.permute.xlu0 %685
      %687 = vrot.lane.b32.xlu0 %v683, 28
      %v688 = vpop.permute.xlu0 %687
      %689 = vrot.lane.b32.xlu0 %v682, 28
      %v690 = vpop.permute.xlu0 %689
      %691 = vrot.lane.b32.xlu0 %v684, 28
      %v692 = vpop.permute.xlu0 %691
      %vm693 = vcmask 228352
      %v694 = vsel %vm693, %v686, %v688
      %v695 = vsel %vm693, %v688, %v690
      %v696 = vsel %vm693, %v690, %v692
      %v698 = vsel %vm206, %v665, 0
      %v701 = vsel %vm210, %v694, 0
      %v704 = vsel %vm210, %v695, 0
      %v707 = vsel %vm210, %v696, 0
      %709 = vmatprep.subr.bf16.mxu0 0
      %710 = vmatpush1.bf16.msra.mxu0 0
      %711 = vmatprep.subr.bf16.mxu0 0
      %712 = vmatpush1.bf16.msra.mxu0 0
      %713 = vmatprep.subr.bf16.mxu0 0
      %714 = vmatpush1.bf16.msra.mxu0 0
      %715 = vmatprep.subr.bf16.mxu0 0
      %716 = vmatpush1.bf16.msra.mxu0 0
      %717 = vmatprep.subr.bf16.mxu0 0
      %718 = vmatpush1.bf16.msra.mxu0 0
      %719 = vmatprep.subr.bf16.mxu0 0
      %720 = vmatpush1.bf16.msra.mxu0 0
      %721 = vmatprep.subr.bf16.mxu0 0
      %722 = vmatpush1.bf16.msra.mxu0 0
      %723 = vmatprep.subr.bf16.mxu0 %v704
      %724 = vmatpush1.bf16.msra.mxu0 %v701
      %725 = vmatprep.subr.bf16.mxu0 0
      %726 = vmatpush2.bf16.msra.mxu0 0
      %727 = vmatprep.subr.bf16.mxu0 0
      %728 = vmatpush2.bf16.msra.mxu0 0
      %729 = vmatprep.subr.bf16.mxu0 0
      %730 = vmatpush2.bf16.msra.mxu0 0
      %731 = vmatprep.subr.bf16.mxu0 0
      %732 = vmatpush2.bf16.msra.mxu0 0
      %733 = vmatprep.subr.bf16.mxu0 0
      %734 = vmatpush2.bf16.msra.mxu0 0
      %735 = vmatprep.subr.bf16.mxu0 0
      %736 = vmatpush2.bf16.msra.mxu0 0
      %737 = vmatprep.subr.bf16.mxu0 0
      %738 = vmatpush2.bf16.msra.mxu0 0
      %739 = vmatprep.subr.bf16.mxu0 0
      %740 = vmatpush2.bf16.msra.mxu0 0
      %741 = vmatprep.mubr.bf16.mxu0 0
      %742 = vmatmul.mubr.bf16.gmra.mxu0 %v698
      %v743 = vpop.f32.mrf.mxu0
      %v744 = vadd.f32 0.0, %v743
      %v745 = vpop.f32.mrf.mxu0
      %v746 = vadd.f32 0.0, %v745
      %v747 = vpop.f32.mrf.mxu0
      %v748 = vpop.f32.mrf.mxu0
      %749 = vdwg.mxu0
      %750 = vmatprep.subr.bf16.mxu0 0
      %751 = vmatpush1.bf16.msra.mxu0 0
      %752 = vmatprep.subr.bf16.mxu0 0
      %753 = vmatpush1.bf16.msra.mxu0 0
      %754 = vmatprep.subr.bf16.mxu0 0
      %755 = vmatpush1.bf16.msra.mxu0 0
      %756 = vmatprep.subr.bf16.mxu0 0
      %757 = vmatpush1.bf16.msra.mxu0 0
      %758 = vmatprep.subr.bf16.mxu0 0
      %759 = vmatpush1.bf16.msra.mxu0 0
      %760 = vmatprep.subr.bf16.mxu0 0
      %761 = vmatpush1.bf16.msra.mxu0 0
      %762 = vmatprep.subr.bf16.mxu0 0
      %763 = vmatpush1.bf16.msra.mxu0 0
      %764 = vmatprep.subr.bf16.mxu0 0
      %765 = vmatpush1.bf16.msra.mxu0 %v707
      %766 = vmatprep.subr.bf16.mxu0 0
      %767 = vmatpush2.bf16.msra.mxu0 0
      %768 = vmatprep.subr.bf16.mxu0 0
      %769 = vmatpush2.bf16.msra.mxu0 0
      %770 = vmatprep.subr.bf16.mxu0 0
      %771 = vmatpush2.bf16.msra.mxu0 0
      %772 = vmatprep.subr.bf16.mxu0 0
      %773 = vmatpush2.bf16.msra.mxu0 0
      %774 = vmatprep.subr.bf16.mxu0 0
      %775 = vmatpush2.bf16.msra.mxu0 0
      %776 = vmatprep.subr.bf16.mxu0 0
      %777 = vmatpush2.bf16.msra.mxu0 0
      %778 = vmatprep.subr.bf16.mxu0 0
      %779 = vmatpush2.bf16.msra.mxu0 0
      %780 = vmatprep.subr.bf16.mxu0 0
      %781 = vmatpush2.bf16.msra.mxu0 0
      %782 = vmatprep.mubr.bf16.mxu0 0
      %783 = vmatmul.mubr.bf16.gmra.mxu0 %v698
      %v784 = vpop.f32.mrf.mxu0
      %v785 = vadd.f32 0.0, %v784
      %v786 = vpop.f32.mrf.mxu0
      %v787 = vpop.f32.mrf.mxu0
      %v788 = vpop.f32.mrf.mxu0
      %789 = vdwg.mxu0
      %v790 = vadd.f32 %v661, %v744
      %v791 = vadd.f32 %v662, %v746
      %v792 = vadd.f32 %v663, %v785
      %s793 = scalar_lea.vmem %s1, 20
      %v794 = vld [vmem:[%s793] sm:$0x7]
      %v795 = vld [vmem:[%s165] sm:$0xff]
      %v797 = vcombine.high %v795, %v795
      %v799 = vunpack.c.l.s4 1983009808
      %v800 = vunpack.c.0.s8 %v799
      %v801 = vlaneseq
      %v802 = vshrl.u32 %v801, 7
      %v803 = vsub.s32 %v800, %v802
      %v804 = vrot.slane %v795, %v803
      %v806 = vunpack.c.l.s4 1983009808
      %v807 = vunpack.c.0.s8 %v806
      %v808 = vlaneseq
      %v809 = vshrl.u32 %v808, 7
      %v810 = vsub.s32 %v807, %v809
      %v811 = vrot.slane %v797, %v810
      %v812 = vcombine.high %v804, %v804
      %v813 = vcombine.high %v811, %v811
      %814 = vrot.lane.b32.xlu0 %v804, 26
      %v815 = vpop.permute.xlu0 %814
      %816 = vrot.lane.b32.xlu0 %v812, 26
      %v817 = vpop.permute.xlu0 %816
      %818 = vrot.lane.b32.xlu0 %v811, 26
      %v819 = vpop.permute.xlu0 %818
      %820 = vrot.lane.b32.xlu0 %v813, 26
      %v821 = vpop.permute.xlu0 %820
      %vm822 = vcmask 211968
      %v823 = vsel %vm822, %v815, %v817
      %v824 = vsel %vm822, %v817, %v819
      %v825 = vsel %vm822, %v819, %v821
      %v827 = vsel %vm206, %v794, 0
      %v830 = vsel %vm210, %v823, 0
      %v833 = vsel %vm210, %v824, 0
      %v836 = vsel %vm210, %v825, 0
      %838 = vmatprep.subr.bf16.mxu0 0
      %839 = vmatpush1.bf16.msra.mxu0 0
      %840 = vmatprep.subr.bf16.mxu0 0
      %841 = vmatpush1.bf16.msra.mxu0 0
      %842 = vmatprep.subr.bf16.mxu0 0
      %843 = vmatpush1.bf16.msra.mxu0 0
      %844 = vmatprep.subr.bf16.mxu0 0
      %845 = vmatpush1.bf16.msra.mxu0 0
      %846 = vmatprep.subr.bf16.mxu0 0
      %847 = vmatpush1.bf16.msra.mxu0 0
      %848 = vmatprep.subr.bf16.mxu0 0
      %849 = vmatpush1.bf16.msra.mxu0 0
      %850 = vmatprep.subr.bf16.mxu0 0
      %851 = vmatpush1.bf16.msra.mxu0 0
      %852 = vmatprep.subr.bf16.mxu0 %v833
      %853 = vmatpush1.bf16.msra.mxu0 %v830
      %854 = vmatprep.subr.bf16.mxu0 0
      %855 = vmatpush2.bf16.msra.mxu0 0
      %856 = vmatprep.subr.bf16.mxu0 0
      %857 = vmatpush2.bf16.msra.mxu0 0
      %858 = vmatprep.subr.bf16.mxu0 0
      %859 = vmatpush2.bf16.msra.mxu0 0
      %860 = vmatprep.subr.bf16.mxu0 0
      %861 = vmatpush2.bf16.msra.mxu0 0
      %862 = vmatprep.subr.bf16.mxu0 0
      %863 = vmatpush2.bf16.msra.mxu0 0
      %864 = vmatprep.subr.bf16.mxu0 0
      %865 = vmatpush2.bf16.msra.mxu0 0
      %866 = vmatprep.subr.bf16.mxu0 0
      %867 = vmatpush2.bf16.msra.mxu0 0
      %868 = vmatprep.subr.bf16.mxu0 0
      %869 = vmatpush2.bf16.msra.mxu0 0
      %870 = vmatprep.mubr.bf16.mxu0 0
      %871 = vmatmul.mubr.bf16.gmra.mxu0 %v827
      %v872 = vpop.f32.mrf.mxu0
      %v873 = vadd.f32 0.0, %v872
      %v874 = vpop.f32.mrf.mxu0
      %v875 = vadd.f32 0.0, %v874
      %v876 = vpop.f32.mrf.mxu0
      %v877 = vpop.f32.mrf.mxu0
      %878 = vdwg.mxu0
      %879 = vmatprep.subr.bf16.mxu0 0
      %880 = vmatpush1.bf16.msra.mxu0 0
      %881 = vmatprep.subr.bf16.mxu0 0
      %882 = vmatpush1.bf16.msra.mxu0 0
      %883 = vmatprep.subr.bf16.mxu0 0
      %884 = vmatpush1.bf16.msra.mxu0 0
      %885 = vmatprep.subr.bf16.mxu0 0
      %886 = vmatpush1.bf16.msra.mxu0 0
      %887 = vmatprep.subr.bf16.mxu0 0
      %888 = vmatpush1.bf16.msra.mxu0 0
      %889 = vmatprep.subr.bf16.mxu0 0
      %890 = vmatpush1.bf16.msra.mxu0 0
      %891 = vmatprep.subr.bf16.mxu0 0
      %892 = vmatpush1.bf16.msra.mxu0 0
      %893 = vmatprep.subr.bf16.mxu0 0
      %894 = vmatpush1.bf16.msra.mxu0 %v836
      %895 = vmatprep.subr.bf16.mxu0 0
      %896 = vmatpush2.bf16.msra.mxu0 0
      %897 = vmatprep.subr.bf16.mxu0 0
      %898 = vmatpush2.bf16.msra.mxu0 0
      %899 = vmatprep.subr.bf16.mxu0 0
      %900 = vmatpush2.bf16.msra.mxu0 0
      %901 = vmatprep.subr.bf16.mxu0 0
      %902 = vmatpush2.bf16.msra.mxu0 0
      %903 = vmatprep.subr.bf16.mxu0 0
      %904 = vmatpush2.bf16.msra.mxu0 0
      %905 = vmatprep.subr.bf16.mxu0 0
      %906 = vmatpush2.bf16.msra.mxu0 0
      %907 = vmatprep.subr.bf16.mxu0 0
      %908 = vmatpush2.bf16.msra.mxu0 0
      %909 = vmatprep.subr.bf16.mxu0 0
      %910 = vmatpush2.bf16.msra.mxu0 0
      %911 = vmatprep.mubr.bf16.mxu0 0
      %912 = vmatmul.mubr.bf16.gmra.mxu0 %v827
      %v913 = vpop.f32.mrf.mxu0
      %v914 = vadd.f32 0.0, %v913
      %v915 = vpop.f32.mrf.mxu0
      %v916 = vpop.f32.mrf.mxu0
      %v917 = vpop.f32.mrf.mxu0
      %918 = vdwg.mxu0
      %v919 = vadd.f32 %v790, %v873
      %v920 = vadd.f32 %v791, %v875
      %v921 = vadd.f32 %v792, %v914
      %s922 = scalar_lea.vmem %s1, 24
      %v923 = vld [vmem:[%s922] sm:$0x7]
      %v924 = vld [vmem:[%s165 + $0x2] sm:$0xff]
      %v926 = vcombine.high %v924, %v924
      %v928 = vunpack.c.l.s4 1983009808
      %v929 = vunpack.c.0.s8 %v928
      %v930 = vlaneseq
      %v931 = vshrl.u32 %v930, 7
      %v932 = vsub.s32 %v929, %v931
      %v933 = vrot.slane %v924, %v932
      %v935 = vunpack.c.l.s4 1983009808
      %v936 = vunpack.c.0.s8 %v935
      %v937 = vlaneseq
      %v938 = vshrl.u32 %v937, 7
      %v939 = vsub.s32 %v936, %v938
      %v940 = vrot.slane %v926, %v939
      %v941 = vcombine.high %v933, %v933
      %v942 = vcombine.high %v940, %v940
      %943 = vrot.lane.b32.xlu0 %v933, 110
      %v944 = vpop.permute.xlu0 %943
      %945 = vrot.lane.b32.xlu0 %v941, 110
      %v946 = vpop.permute.xlu0 %945
      %947 = vrot.lane.b32.xlu0 %v940, 110
      %v948 = vpop.permute.xlu0 %947
      %949 = vrot.lane.b32.xlu0 %v942, 110
      %v950 = vpop.permute.xlu0 %949
      %vm951 = vcmask 900096
      %v952 = vsel %vm951, %v944, %v946
      %v953 = vsel %vm951, %v946, %v948
      %v954 = vsel %vm951, %v948, %v950
      %v956 = vsel %vm206, %v923, 0
      %v959 = vsel %vm210, %v952, 0
      %v962 = vsel %vm210, %v953, 0
      %v965 = vsel %vm210, %v954, 0
      %967 = vmatprep.subr.bf16.mxu0 0
      %968 = vmatpush1.bf16.msra.mxu0 0
      %969 = vmatprep.subr.bf16.mxu0 0
      %970 = vmatpush1.bf16.msra.mxu0 0
      %971 = vmatprep.subr.bf16.mxu0 0
      %972 = vmatpush1.bf16.msra.mxu0 0
      %973 = vmatprep.subr.bf16.mxu0 0
      %974 = vmatpush1.bf16.msra.mxu0 0
      %975 = vmatprep.subr.bf16.mxu0 0
      %976 = vmatpush1.bf16.msra.mxu0 0
      %977 = vmatprep.subr.bf16.mxu0 0
      %978 = vmatpush1.bf16.msra.mxu0 0
      %979 = vmatprep.subr.bf16.mxu0 0
      %980 = vmatpush1.bf16.msra.mxu0 0
      %981 = vmatprep.subr.bf16.mxu0 %v962
      %982 = vmatpush1.bf16.msra.mxu0 %v959
      %983 = vmatprep.subr.bf16.mxu0 0
      %984 = vmatpush2.bf16.msra.mxu0 0
      %985 = vmatprep.subr.bf16.mxu0 0
      %986 = vmatpush2.bf16.msra.mxu0 0
      %987 = vmatprep.subr.bf16.mxu0 0
      %988 = vmatpush2.bf16.msra.mxu0 0
      %989 = vmatprep.subr.bf16.mxu0 0
      %990 = vmatpush2.bf16.msra.mxu0 0
      %991 = vmatprep.subr.bf16.mxu0 0
      %992 = vmatpush2.bf16.msra.mxu0 0
      %993 = vmatprep.subr.bf16.mxu0 0
      %994 = vmatpush2.bf16.msra.mxu0 0
      %995 = vmatprep.subr.bf16.mxu0 0
      %996 = vmatpush2.bf16.msra.mxu0 0
      %997 = vmatprep.subr.bf16.mxu0 0
      %998 = vmatpush2.bf16.msra.mxu0 0
      %999 = vmatprep.mubr.bf16.mxu0 0
      %1000 = vmatmul.mubr.bf16.gmra.mxu0 %v956
      %v1001 = vpop.f32.mrf.mxu0
      %v1002 = vadd.f32 0.0, %v1001
      %v1003 = vpop.f32.mrf.mxu0
      %v1004 = vadd.f32 0.0, %v1003
      %v1005 = vpop.f32.mrf.mxu0
      %v1006 = vpop.f32.mrf.mxu0
      %1007 = vdwg.mxu0
      %1008 = vmatprep.subr.bf16.mxu0 0
      %1009 = vmatpush1.bf16.msra.mxu0 0
      %1010 = vmatprep.subr.bf16.mxu0 0
      %1011 = vmatpush1.bf16.msra.mxu0 0
      %1012 = vmatprep.subr.bf16.mxu0 0
      %1013 = vmatpush1.bf16.msra.mxu0 0
      %1014 = vmatprep.subr.bf16.mxu0 0
      %1015 = vmatpush1.bf16.msra.mxu0 0
      %1016 = vmatprep.subr.bf16.mxu0 0
      %1017 = vmatpush1.bf16.msra.mxu0 0
      %1018 = vmatprep.subr.bf16.mxu0 0
      %1019 = vmatpush1.bf16.msra.mxu0 0
      %1020 = vmatprep.subr.bf16.mxu0 0
      %1021 = vmatpush1.bf16.msra.mxu0 0
      %1022 = vmatprep.subr.bf16.mxu0 0
      %1023 = vmatpush1.bf16.msra.mxu0 %v965
      %1024 = vmatprep.subr.bf16.mxu0 0
      %1025 = vmatpush2.bf16.msra.mxu0 0
      %1026 = vmatprep.subr.bf16.mxu0 0
      %1027 = vmatpush2.bf16.msra.mxu0 0
      %1028 = vmatprep.subr.bf16.mxu0 0
      %1029 = vmatpush2.bf16.msra.mxu0 0
      %1030 = vmatprep.subr.bf16.mxu0 0
      %1031 = vmatpush2.bf16.msra.mxu0 0
      %1032 = vmatprep.subr.bf16.mxu0 0
      %1033 = vmatpush2.bf16.msra.mxu0 0
      %1034 = vmatprep.subr.bf16.mxu0 0
      %1035 = vmatpush2.bf16.msra.mxu0 0
      %1036 = vmatprep.subr.bf16.mxu0 0
      %1037 = vmatpush2.bf16.msra.mxu0 0
      %1038 = vmatprep.subr.bf16.mxu0 0
      %1039 = vmatpush2.bf16.msra.mxu0 0
      %1040 = vmatprep.mubr.bf16.mxu0 0
      %1041 = vmatmul.mubr.bf16.gmra.mxu0 %v956
      %v1042 = vpop.f32.mrf.mxu0
      %v1043 = vadd.f32 0.0, %v1042
      %v1044 = vpop.f32.mrf.mxu0
      %v1045 = vpop.f32.mrf.mxu0
      %v1046 = vpop.f32.mrf.mxu0
      %1047 = vdwg.mxu0
      %v1048 = vadd.f32 %v919, %v1002
      %v1049 = vadd.f32 %v920, %v1004
      %v1050 = vadd.f32 %v921, %v1043
      %s1051 = scalar_lea.vmem %s1, 28
      %v1052 = vld [vmem:[%s1051] sm:$0x7]
      %v1053 = vld [vmem:[%s165 + $0x2] sm:$0xff]
      %v1055 = vcombine.high %v1053, %v1053
      %v1057 = vunpack.c.l.s4 1983009808
      %v1058 = vunpack.c.0.s8 %v1057
      %v1059 = vlaneseq
      %v1060 = vshrl.u32 %v1059, 7
      %v1061 = vsub.s32 %v1058, %v1060
      %v1062 = vrot.slane %v1053, %v1061
      %v1064 = vunpack.c.l.s4 1983009808
      %v1065 = vunpack.c.0.s8 %v1064
      %v1066 = vlaneseq
      %v1067 = vshrl.u32 %v1066, 7
      %v1068 = vsub.s32 %v1065, %v1067
      %v1069 = vrot.slane %v1055, %v1068
      %v1070 = vcombine.high %v1062, %v1062
      %v1071 = vcombine.high %v1069, %v1069
      %1072 = vrot.lane.b32.xlu0 %v1062, 108
      %v1073 = vpop.permute.xlu0 %1072
      %1074 = vrot.lane.b32.xlu0 %v1070, 108
      %v1075 = vpop.permute.xlu0 %1074
      %1076 = vrot.lane.b32.xlu0 %v1069, 108
      %v1077 = vpop.permute.xlu0 %1076
      %1078 = vrot.lane.b32.xlu0 %v1071, 108
      %v1079 = vpop.permute.xlu0 %1078
      %vm1080 = vcmask 883712
      %v1081 = vsel %vm1080, %v1073, %v1075
      %v1082 = vsel %vm1080, %v1075, %v1077
      %v1083 = vsel %vm1080, %v1077, %v1079
      %v1085 = vsel %vm206, %v1052, 0
      %v1088 = vsel %vm210, %v1081, 0
      %v1091 = vsel %vm210, %v1082, 0
      %v1094 = vsel %vm210, %v1083, 0
      %1096 = vmatprep.subr.bf16.mxu0 0
      %1097 = vmatpush1.bf16.msra.mxu0 0
      %1098 = vmatprep.subr.bf16.mxu0 0
      %1099 = vmatpush1.bf16.msra.mxu0 0
      %1100 = vmatprep.subr.bf16.mxu0 0
      %1101 = vmatpush1.bf16.msra.mxu0 0
      %1102 = vmatprep.subr.bf16.mxu0 0
      %1103 = vmatpush1.bf16.msra.mxu0 0
      %1104 = vmatprep.subr.bf16.mxu0 0
      %1105 = vmatpush1.bf16.msra.mxu0 0
      %1106 = vmatprep.subr.bf16.mxu0 0
      %1107 = vmatpush1.bf16.msra.mxu0 0
      %1108 = vmatprep.subr.bf16.mxu0 0
      %1109 = vmatpush1.bf16.msra.mxu0 0
      %1110 = vmatprep.subr.bf16.mxu0 %v1091
      %1111 = vmatpush1.bf16.msra.mxu0 %v1088
      %1112 = vmatprep.subr.bf16.mxu0 0
      %1113 = vmatpush2.bf16.msra.mxu0 0
      %1114 = vmatprep.subr.bf16.mxu0 0
      %1115 = vmatpush2.bf16.msra.mxu0 0
      %1116 = vmatprep.subr.bf16.mxu0 0
      %1117 = vmatpush2.bf16.msra.mxu0 0
      %1118 = vmatprep.subr.bf16.mxu0 0
      %1119 = vmatpush2.bf16.msra.mxu0 0
      %1120 = vmatprep.subr.bf16.mxu0 0
      %1121 = vmatpush2.bf16.msra.mxu0 0
      %1122 = vmatprep.subr.bf16.mxu0 0
      %1123 = vmatpush2.bf16.msra.mxu0 0
      %1124 = vmatprep.subr.bf16.mxu0 0
      %1125 = vmatpush2.bf16.msra.mxu0 0
      %1126 = vmatprep.subr.bf16.mxu0 0
      %1127 = vmatpush2.bf16.msra.mxu0 0
      %1128 = vmatprep.mubr.bf16.mxu0 0
      %1129 = vmatmul.mubr.bf16.gmra.mxu0 %v1085
      %v1130 = vpop.f32.mrf.mxu0
      %v1131 = vadd.f32 0.0, %v1130
      %v1132 = vpop.f32.mrf.mxu0
      %v1133 = vadd.f32 0.0, %v1132
      %v1134 = vpop.f32.mrf.mxu0
      %v1135 = vpop.f32.mrf.mxu0
      %1136 = vdwg.mxu0
      %1137 = vmatprep.subr.bf16.mxu0 0
      %1138 = vmatpush1.bf16.msra.mxu0 0
      %1139 = vmatprep.subr.bf16.mxu0 0
      %1140 = vmatpush1.bf16.msra.mxu0 0
      %1141 = vmatprep.subr.bf16.mxu0 0
      %1142 = vmatpush1.bf16.msra.mxu0 0
      %1143 = vmatprep.subr.bf16.mxu0 0
      %1144 = vmatpush1.bf16.msra.mxu0 0
      %1145 = vmatprep.subr.bf16.mxu0 0
      %1146 = vmatpush1.bf16.msra.mxu0 0
      %1147 = vmatprep.subr.bf16.mxu0 0
      %1148 = vmatpush1.bf16.msra.mxu0 0
      %1149 = vmatprep.subr.bf16.mxu0 0
      %1150 = vmatpush1.bf16.msra.mxu0 0
      %1151 = vmatprep.subr.bf16.mxu0 0
      %1152 = vmatpush1.bf16.msra.mxu0 %v1094
      %1153 = vmatprep.subr.bf16.mxu0 0
      %1154 = vmatpush2.bf16.msra.mxu0 0
      %1155 = vmatprep.subr.bf16.mxu0 0
      %1156 = vmatpush2.bf16.msra.mxu0 0
      %1157 = vmatprep.subr.bf16.mxu0 0
      %1158 = vmatpush2.bf16.msra.mxu0 0
      %1159 = vmatprep.subr.bf16.mxu0 0
      %1160 = vmatpush2.bf16.msra.mxu0 0
      %1161 = vmatprep.subr.bf16.mxu0 0
      %1162 = vmatpush2.bf16.msra.mxu0 0
      %1163 = vmatprep.subr.bf16.mxu0 0
      %1164 = vmatpush2.bf16.msra.mxu0 0
      %1165 = vmatprep.subr.bf16.mxu0 0
      %1166 = vmatpush2.bf16.msra.mxu0 0
      %1167 = vmatprep.subr.bf16.mxu0 0
      %1168 = vmatpush2.bf16.msra.mxu0 0
      %1169 = vmatprep.mubr.bf16.mxu0 0
      %1170 = vmatmul.mubr.bf16.gmra.mxu0 %v1085
      %v1171 = vpop.f32.mrf.mxu0
      %v1172 = vadd.f32 0.0, %v1171
      %v1173 = vpop.f32.mrf.mxu0
      %v1174 = vpop.f32.mrf.mxu0
      %v1175 = vpop.f32.mrf.mxu0
      %1176 = vdwg.mxu0
      %v1177 = vadd.f32 %v1048, %v1131
      %v1178 = vadd.f32 %v1049, %v1133
      %v1179 = vadd.f32 %v1050, %v1172
      %s1180 = scalar_lea.vmem %s1, 32
      %v1181 = vld [vmem:[%s1180] sm:$0x7]
      %v1182 = vld [vmem:[%s165 + $0x2] sm:$0xff]
      %v1184 = vcombine.high %v1182, %v1182
      %v1186 = vunpack.c.l.s4 1983009808
      %v1187 = vunpack.c.0.s8 %v1186
      %v1188 = vlaneseq
      %v1189 = vshrl.u32 %v1188, 7
      %v1190 = vsub.s32 %v1187, %v1189
      %v1191 = vrot.slane %v1182, %v1190
      %v1193 = vunpack.c.l.s4 1983009808
      %v1194 = vunpack.c.0.s8 %v1193
      %v1195 = vlaneseq
      %v1196 = vshrl.u32 %v1195, 7
      %v1197 = vsub.s32 %v1194, %v1196
      %v1198 = vrot.slane %v1184, %v1197
      %v1199 = vcombine.high %v1191, %v1191
      %v1200 = vcombine.high %v1198, %v1198
      %1201 = vrot.lane.b32.xlu0 %v1191, 106
      %v1202 = vpop.permute.xlu0 %1201
      %1203 = vrot.lane.b32.xlu0 %v1199, 106
      %v1204 = vpop.permute.xlu0 %1203
      %1205 = vrot.lane.b32.xlu0 %v1198, 106
      %v1206 = vpop.permute.xlu0 %1205
      %1207 = vrot.lane.b32.xlu0 %v1200, 106
      %v1208 = vpop.permute.xlu0 %1207
      %vm1209 = vcmask 867328
      %v1210 = vsel %vm1209, %v1202, %v1204
      %v1211 = vsel %vm1209, %v1204, %v1206
      %v1212 = vsel %vm1209, %v1206, %v1208
      %v1214 = vsel %vm206, %v1181, 0
      %v1217 = vsel %vm210, %v1210, 0
      %v1220 = vsel %vm210, %v1211, 0
      %v1223 = vsel %vm210, %v1212, 0
      %1225 = vmatprep.subr.bf16.mxu0 0
      %1226 = vmatpush1.bf16.msra.mxu0 0
      %1227 = vmatprep.subr.bf16.mxu0 0
      %1228 = vmatpush1.bf16.msra.mxu0 0
      %1229 = vmatprep.subr.bf16.mxu0 0
      %1230 = vmatpush1.bf16.msra.mxu0 0
      %1231 = vmatprep.subr.bf16.mxu0 0
      %1232 = vmatpush1.bf16.msra.mxu0 0
      %1233 = vmatprep.subr.bf16.mxu0 0
      %1234 = vmatpush1.bf16.msra.mxu0 0
      %1235 = vmatprep.subr.bf16.mxu0 0
      %1236 = vmatpush1.bf16.msra.mxu0 0
      %1237 = vmatprep.subr.bf16.mxu0 0
      %1238 = vmatpush1.bf16.msra.mxu0 0
      %1239 = vmatprep.subr.bf16.mxu0 %v1220
      %1240 = vmatpush1.bf16.msra.mxu0 %v1217
      %1241 = vmatprep.subr.bf16.mxu0 0
      %1242 = vmatpush2.bf16.msra.mxu0 0
      %1243 = vmatprep.subr.bf16.mxu0 0
      %1244 = vmatpush2.bf16.msra.mxu0 0
      %1245 = vmatprep.subr.bf16.mxu0 0
      %1246 = vmatpush2.bf16.msra.mxu0 0
      %1247 = vmatprep.subr.bf16.mxu0 0
      %1248 = vmatpush2.bf16.msra.mxu0 0
      %1249 = vmatprep.subr.bf16.mxu0 0
      %1250 = vmatpush2.bf16.msra.mxu0 0
      %1251 = vmatprep.subr.bf16.mxu0 0
      %1252 = vmatpush2.bf16.msra.mxu0 0
      %1253 = vmatprep.subr.bf16.mxu0 0
      %1254 = vmatpush2.bf16.msra.mxu0 0
      %1255 = vmatprep.subr.bf16.mxu0 0
      %1256 = vmatpush2.bf16.msra.mxu0 0
      %1257 = vmatprep.mubr.bf16.mxu0 0
      %1258 = vmatmul.mubr.bf16.gmra.mxu0 %v1214
      %v1259 = vpop.f32.mrf.mxu0
      %v1260 = vadd.f32 0.0, %v1259
      %v1261 = vpop.f32.mrf.mxu0
      %v1262 = vadd.f32 0.0, %v1261
      %v1263 = vpop.f32.mrf.mxu0
      %v1264 = vpop.f32.mrf.mxu0
      %1265 = vdwg.mxu0
      %1266 = vmatprep.subr.bf16.mxu0 0
      %1267 = vmatpush1.bf16.msra.mxu0 0
      %1268 = vmatprep.subr.bf16.mxu0 0
      %1269 = vmatpush1.bf16.msra.mxu0 0
      %1270 = vmatprep.subr.bf16.mxu0 0
      %1271 = vmatpush1.bf16.msra.mxu0 0
      %1272 = vmatprep.subr.bf16.mxu0 0
      %1273 = vmatpush1.bf16.msra.mxu0 0
      %1274 = vmatprep.subr.bf16.mxu0 0
      %1275 = vmatpush1.bf16.msra.mxu0 0
      %1276 = vmatprep.subr.bf16.mxu0 0
      %1277 = vmatpush1.bf16.msra.mxu0 0
      %1278 = vmatprep.subr.bf16.mxu0 0
      %1279 = vmatpush1.bf16.msra.mxu0 0
      %1280 = vmatprep.subr.bf16.mxu0 0
      %1281 = vmatpush1.bf16.msra.mxu0 %v1223
      %1282 = vmatprep.subr.bf16.mxu0 0
      %1283 = vmatpush2.bf16.msra.mxu0 0
      %1284 = vmatprep.subr.bf16.mxu0 0
      %1285 = vmatpush2.bf16.msra.mxu0 0
      %1286 = vmatprep.subr.bf16.mxu0 0
      %1287 = vmatpush2.bf16.msra.mxu0 0
      %1288 = vmatprep.subr.bf16.mxu0 0
      %1289 = vmatpush2.bf16.msra.mxu0 0
      %1290 = vmatprep.subr.bf16.mxu0 0
      %1291 = vmatpush2.bf16.msra.mxu0 0
      %1292 = vmatprep.subr.bf16.mxu0 0
      %1293 = vmatpush2.bf16.msra.mxu0 0
      %1294 = vmatprep.subr.bf16.mxu0 0
      %1295 = vmatpush2.bf16.msra.mxu0 0
      %1296 = vmatprep.subr.bf16.mxu0 0
      %1297 = vmatpush2.bf16.msra.mxu0 0
      %1298 = vmatprep.mubr.bf16.mxu0 0
      %1299 = vmatmul.mubr.bf16.gmra.mxu0 %v1214
      %v1300 = vpop.f32.mrf.mxu0
      %v1301 = vadd.f32 0.0, %v1300
      %v1302 = vpop.f32.mrf.mxu0
      %v1303 = vpop.f32.mrf.mxu0
      %v1304 = vpop.f32.mrf.mxu0
      %1305 = vdwg.mxu0
      %v1306 = vadd.f32 %v1177, %v1260
      %v1307 = vadd.f32 %v1178, %v1262
      %v1308 = vadd.f32 %v1179, %v1301
      %s1309 = scalar_lea.vmem %s1, 36
      %v1310 = vld [vmem:[%s1309] sm:$0x7]
      %v1311 = vld [vmem:[%s165] sm:$0x3f]
      %v1313 = vcombine.high %v1311, %v1311
      %v1315 = vunpack.c.l.s4 1983009808
      %v1316 = vunpack.c.0.s8 %v1315
      %v1317 = vlaneseq
      %v1318 = vshrl.u32 %v1317, 7
      %v1319 = vsub.s32 %v1316, %v1318
      %v1320 = vrot.slane %v1311, %v1319
      %v1322 = vunpack.c.l.s4 1983009808
      %v1323 = vunpack.c.0.s8 %v1322
      %v1324 = vlaneseq
      %v1325 = vshrl.u32 %v1324, 7
      %v1326 = vsub.s32 %v1323, %v1325
      %v1327 = vrot.slane %v1313, %v1326
      %v1328 = vcombine.high %v1320, %v1320
      %v1330 = vsel %vm206, %v1310, 0
      %v1333 = vsel %vm210, %v1320, 0
      %v1336 = vsel %vm210, %v1328, 0
      %v1339 = vsel %vm210, %v1327, 0
      %1341 = vmatprep.subr.bf16.mxu0 0
      %1342 = vmatpush1.bf16.msra.mxu0 0
      %1343 = vmatprep.subr.bf16.mxu0 0
      %1344 = vmatpush1.bf16.msra.mxu0 0
      %1345 = vmatprep.subr.bf16.mxu0 0
      %1346 = vmatpush1.bf16.msra.mxu0 0
      %1347 = vmatprep.subr.bf16.mxu0 0
      %1348 = vmatpush1.bf16.msra.mxu0 0
      %1349 = vmatprep.subr.bf16.mxu0 0
      %1350 = vmatpush1.bf16.msra.mxu0 0
      %1351 = vmatprep.subr.bf16.mxu0 0
      %1352 = vmatpush1.bf16.msra.mxu0 0
      %1353 = vmatprep.subr.bf16.mxu0 0
      %1354 = vmatpush1.bf16.msra.mxu0 0
      %1355 = vmatprep.subr.bf16.mxu0 %v1336
      %1356 = vmatpush1.bf16.msra.mxu0 %v1333
      %1357 = vmatprep.subr.bf16.mxu0 0
      %1358 = vmatpush2.bf16.msra.mxu0 0
      %1359 = vmatprep.subr.bf16.mxu0 0
      %1360 = vmatpush2.bf16.msra.mxu0 0
      %1361 = vmatprep.subr.bf16.mxu0 0
      %1362 = vmatpush2.bf16.msra.mxu0 0
      %1363 = vmatprep.subr.bf16.mxu0 0
      %1364 = vmatpush2.bf16.msra.mxu0 0
      %1365 = vmatprep.subr.bf16.mxu0 0
      %1366 = vmatpush2.bf16.msra.mxu0 0
      %1367 = vmatprep.subr.bf16.mxu0 0
      %1368 = vmatpush2.bf16.msra.mxu0 0
      %1369 = vmatprep.subr.bf16.mxu0 0
      %1370 = vmatpush2.bf16.msra.mxu0 0
      %1371 = vmatprep.subr.bf16.mxu0 0
      %1372 = vmatpush2.bf16.msra.mxu0 0
      %1373 = vmatprep.mubr.bf16.mxu0 0
      %1374 = vmatmul.mubr.bf16.gmra.mxu0 %v1330
      %v1375 = vpop.f32.mrf.mxu0
      %v1376 = vadd.f32 0.0, %v1375
      %v1377 = vpop.f32.mrf.mxu0
      %v1378 = vadd.f32 0.0, %v1377
      %v1379 = vpop.f32.mrf.mxu0
      %v1380 = vpop.f32.mrf.mxu0
      %1381 = vdwg.mxu0
      %1382 = vmatprep.subr.bf16.mxu0 0
      %1383 = vmatpush1.bf16.msra.mxu0 0
      %1384 = vmatprep.subr.bf16.mxu0 0
      %1385 = vmatpush1.bf16.msra.mxu0 0
      %1386 = vmatprep.subr.bf16.mxu0 0
      %1387 = vmatpush1.bf16.msra.mxu0 0
      %1388 = vmatprep.subr.bf16.mxu0 0
      %1389 = vmatpush1.bf16.msra.mxu0 0
      %1390 = vmatprep.subr.bf16.mxu0 0
      %1391 = vmatpush1.bf16.msra.mxu0 0
      %1392 = vmatprep.subr.bf16.mxu0 0
      %1393 = vmatpush1.bf16.msra.mxu0 0
      %1394 = vmatprep.subr.bf16.mxu0 0
      %1395 = vmatpush1.bf16.msra.mxu0 0
      %1396 = vmatprep.subr.bf16.mxu0 0
      %1397 = vmatpush1.bf16.msra.mxu0 %v1339
      %1398 = vmatprep.subr.bf16.mxu0 0
      %1399 = vmatpush2.bf16.msra.mxu0 0
      %1400 = vmatprep.subr.bf16.mxu0 0
      %1401 = vmatpush2.bf16.msra.mxu0 0
      %1402 = vmatprep.subr.bf16.mxu0 0
      %1403 = vmatpush2.bf16.msra.mxu0 0
      %1404 = vmatprep.subr.bf16.mxu0 0
      %1405 = vmatpush2.bf16.msra.mxu0 0
      %1406 = vmatprep.subr.bf16.mxu0 0
      %1407 = vmatpush2.bf16.msra.mxu0 0
      %1408 = vmatprep.subr.bf16.mxu0 0
      %1409 = vmatpush2.bf16.msra.mxu0 0
      %1410 = vmatprep.subr.bf16.mxu0 0
      %1411 = vmatpush2.bf16.msra.mxu0 0
      %1412 = vmatprep.subr.bf16.mxu0 0
      %1413 = vmatpush2.bf16.msra.mxu0 0
      %1414 = vmatprep.mubr.bf16.mxu0 0
      %1415 = vmatmul.mubr.bf16.gmra.mxu0 %v1330
      %v1416 = vpop.f32.mrf.mxu0
      %v1417 = vadd.f32 0.0, %v1416
      %v1418 = vpop.f32.mrf.mxu0
      %v1419 = vpop.f32.mrf.mxu0
      %v1420 = vpop.f32.mrf.mxu0
      %1421 = vdwg.mxu0
      %v1422 = vadd.f32 %v1306, %v1376
      %v1423 = vadd.f32 %v1307, %v1378
      %v1424 = vadd.f32 %v1308, %v1417
      %s1425 = scalar_lea.vmem %s1, 40
      %v1426 = vld [vmem:[%s1425] sm:$0x7]
      %v1427 = vld [vmem:[%s165] sm:$0xff]
      %v1429 = vcombine.high %v1427, %v1427
      %v1431 = vunpack.c.l.s4 1983009808
      %v1432 = vunpack.c.0.s8 %v1431
      %v1433 = vlaneseq
      %v1434 = vshrl.u32 %v1433, 7
      %v1435 = vsub.s32 %v1432, %v1434
      %v1436 = vrot.slane %v1427, %v1435
      %v1438 = vunpack.c.l.s4 1983009808
      %v1439 = vunpack.c.0.s8 %v1438
      %v1440 = vlaneseq
      %v1441 = vshrl.u32 %v1440, 7
      %v1442 = vsub.s32 %v1439, %v1441
      %v1443 = vrot.slane %v1429, %v1442
      %v1444 = vcombine.high %v1436, %v1436
      %v1445 = vcombine.high %v1443, %v1443
      %1446 = vrot.lane.b32.xlu0 %v1436, 124
      %v1447 = vpop.permute.xlu0 %1446
      %1448 = vrot.lane.b32.xlu0 %v1444, 124
      %v1449 = vpop.permute.xlu0 %1448
      %1450 = vrot.lane.b32.xlu0 %v1443, 124
      %v1451 = vpop.permute.xlu0 %1450
      %1452 = vrot.lane.b32.xlu0 %v1445, 124
      %v1453 = vpop.permute.xlu0 %1452
      %vm1454 = vcmask 1014784
      %v1455 = vsel %vm1454, %v1447, %v1449
      %v1456 = vsel %vm1454, %v1449, %v1451
      %v1457 = vsel %vm1454, %v1451, %v1453
      %v1459 = vsel %vm206, %v1426, 0
      %v1462 = vsel %vm210, %v1455, 0
      %v1465 = vsel %vm210, %v1456, 0
      %v1468 = vsel %vm210, %v1457, 0
      %1470 = vmatprep.subr.bf16.mxu0 0
      %1471 = vmatpush1.bf16.msra.mxu0 0
      %1472 = vmatprep.subr.bf16.mxu0 0
      %1473 = vmatpush1.bf16.msra.mxu0 0
      %1474 = vmatprep.subr.bf16.mxu0 0
      %1475 = vmatpush1.bf16.msra.mxu0 0
      %1476 = vmatprep.subr.bf16.mxu0 0
      %1477 = vmatpush1.bf16.msra.mxu0 0
      %1478 = vmatprep.subr.bf16.mxu0 0
      %1479 = vmatpush1.bf16.msra.mxu0 0
      %1480 = vmatprep.subr.bf16.mxu0 0
      %1481 = vmatpush1.bf16.msra.mxu0 0
      %1482 = vmatprep.subr.bf16.mxu0 0
      %1483 = vmatpush1.bf16.msra.mxu0 0
      %1484 = vmatprep.subr.bf16.mxu0 %v1465
      %1485 = vmatpush1.bf16.msra.mxu0 %v1462
      %1486 = vmatprep.subr.bf16.mxu0 0
      %1487 = vmatpush2.bf16.msra.mxu0 0
      %1488 = vmatprep.subr.bf16.mxu0 0
      %1489 = vmatpush2.bf16.msra.mxu0 0
      %1490 = vmatprep.subr.bf16.mxu0 0
      %1491 = vmatpush2.bf16.msra.mxu0 0
      %1492 = vmatprep.subr.bf16.mxu0 0
      %1493 = vmatpush2.bf16.msra.mxu0 0
      %1494 = vmatprep.subr.bf16.mxu0 0
      %1495 = vmatpush2.bf16.msra.mxu0 0
      %1496 = vmatprep.subr.bf16.mxu0 0
      %1497 = vmatpush2.bf16.msra.mxu0 0
      %1498 = vmatprep.subr.bf16.mxu0 0
      %1499 = vmatpush2.bf16.msra.mxu0 0
      %1500 = vmatprep.subr.bf16.mxu0 0
      %1501 = vmatpush2.bf16.msra.mxu0 0
      %1502 = vmatprep.mubr.bf16.mxu0 0
      %1503 = vmatmul.mubr.bf16.gmra.mxu0 %v1459
      %v1504 = vpop.f32.mrf.mxu0
      %v1505 = vadd.f32 0.0, %v1504
      %v1506 = vpop.f32.mrf.mxu0
      %v1507 = vadd.f32 0.0, %v1506
      %v1508 = vpop.f32.mrf.mxu0
      %v1509 = vpop.f32.mrf.mxu0
      %1510 = vdwg.mxu0
      %1511 = vmatprep.subr.bf16.mxu0 0
      %1512 = vmatpush1.bf16.msra.mxu0 0
      %1513 = vmatprep.subr.bf16.mxu0 0
      %1514 = vmatpush1.bf16.msra.mxu0 0
      %1515 = vmatprep.subr.bf16.mxu0 0
      %1516 = vmatpush1.bf16.msra.mxu0 0
      %1517 = vmatprep.subr.bf16.mxu0 0
      %1518 = vmatpush1.bf16.msra.mxu0 0
      %1519 = vmatprep.subr.bf16.mxu0 0
      %1520 = vmatpush1.bf16.msra.mxu0 0
      %1521 = vmatprep.subr.bf16.mxu0 0
      %1522 = vmatpush1.bf16.msra.mxu0 0
      %1523 = vmatprep.subr.bf16.mxu0 0
      %1524 = vmatpush1.bf16.msra.mxu0 0
      %1525 = vmatprep.subr.bf16.mxu0 0
      %1526 = vmatpush1.bf16.msra.mxu0 %v1468
      %1527 = vmatprep.subr.bf16.mxu0 0
      %1528 = vmatpush2.bf16.msra.mxu0 0
      %1529 = vmatprep.subr.bf16.mxu0 0
      %1530 = vmatpush2.bf16.msra.mxu0 0
      %1531 = vmatprep.subr.bf16.mxu0 0
      %1532 = vmatpush2.bf16.msra.mxu0 0
      %1533 = vmatprep.subr.bf16.mxu0 0
      %1534 = vmatpush2.bf16.msra.mxu0 0
      %1535 = vmatprep.subr.bf16.mxu0 0
      %1536 = vmatpush2.bf16.msra.mxu0 0
      %1537 = vmatprep.subr.bf16.mxu0 0
      %1538 = vmatpush2.bf16.msra.mxu0 0
      %1539 = vmatprep.subr.bf16.mxu0 0
      %1540 = vmatpush2.bf16.msra.mxu0 0
      %1541 = vmatprep.subr.bf16.mxu0 0
      %1542 = vmatpush2.bf16.msra.mxu0 0
      %1543 = vmatprep.mubr.bf16.mxu0 0
      %1544 = vmatmul.mubr.bf16.gmra.mxu0 %v1459
      %v1545 = vpop.f32.mrf.mxu0
      %v1546 = vadd.f32 0.0, %v1545
      %v1547 = vpop.f32.mrf.mxu0
      %v1548 = vpop.f32.mrf.mxu0
      %v1549 = vpop.f32.mrf.mxu0
      %1550 = vdwg.mxu0
      %v1551 = vadd.f32 %v1422, %v1505
      %v1552 = vadd.f32 %v1423, %v1507
      %v1553 = vadd.f32 %v1424, %v1546
      %s1554 = scalar_lea.vmem %s1, 44
      %v1555 = vld [vmem:[%s1554] sm:$0x7]
      %v1556 = vld [vmem:[%s165] sm:$0xff]
      %v1558 = vcombine.high %v1556, %v1556
      %v1560 = vunpack.c.l.s4 1983009808
      %v1561 = vunpack.c.0.s8 %v1560
      %v1562 = vlaneseq
      %v1563 = vshrl.u32 %v1562, 7
      %v1564 = vsub.s32 %v1561, %v1563
      %v1565 = vrot.slane %v1556, %v1564
      %v1567 = vunpack.c.l.s4 1983009808
      %v1568 = vunpack.c.0.s8 %v1567
      %v1569 = vlaneseq
      %v1570 = vshrl.u32 %v1569, 7
      %v1571 = vsub.s32 %v1568, %v1570
      %v1572 = vrot.slane %v1558, %v1571
      %v1573 = vcombine.high %v1565, %v1565
      %v1574 = vcombine.high %v1572, %v1572
      %1575 = vrot.lane.b32.xlu0 %v1565, 120
      %v1576 = vpop.permute.xlu0 %1575
      %1577 = vrot.lane.b32.xlu0 %v1573, 120
      %v1578 = vpop.permute.xlu0 %1577
      %1579 = vrot.lane.b32.xlu0 %v1572, 120
      %v1580 = vpop.permute.xlu0 %1579
      %1581 = vrot.lane.b32.xlu0 %v1574, 120
      %v1582 = vpop.permute.xlu0 %1581
      %vm1583 = vcmask 982016
      %v1584 = vsel %vm1583, %v1576, %v1578
      %v1585 = vsel %vm1583, %v1578, %v1580
      %v1586 = vsel %vm1583, %v1580, %v1582
      %v1588 = vsel %vm206, %v1555, 0
      %v1591 = vsel %vm210, %v1584, 0
      %v1594 = vsel %vm210, %v1585, 0
      %v1597 = vsel %vm210, %v1586, 0
      %1599 = vmatprep.subr.bf16.mxu0 0
      %1600 = vmatpush1.bf16.msra.mxu0 0
      %1601 = vmatprep.subr.bf16.mxu0 0
      %1602 = vmatpush1.bf16.msra.mxu0 0
      %1603 = vmatprep.subr.bf16.mxu0 0
      %1604 = vmatpush1.bf16.msra.mxu0 0
      %1605 = vmatprep.subr.bf16.mxu0 0
      %1606 = vmatpush1.bf16.msra.mxu0 0
      %1607 = vmatprep.subr.bf16.mxu0 0
      %1608 = vmatpush1.bf16.msra.mxu0 0
      %1609 = vmatprep.subr.bf16.mxu0 0
      %1610 = vmatpush1.bf16.msra.mxu0 0
      %1611 = vmatprep.subr.bf16.mxu0 0
      %1612 = vmatpush1.bf16.msra.mxu0 0
      %1613 = vmatprep.subr.bf16.mxu0 %v1594
      %1614 = vmatpush1.bf16.msra.mxu0 %v1591
      %1615 = vmatprep.subr.bf16.mxu0 0
      %1616 = vmatpush2.bf16.msra.mxu0 0
      %1617 = vmatprep.subr.bf16.mxu0 0
      %1618 = vmatpush2.bf16.msra.mxu0 0
      %1619 = vmatprep.subr.bf16.mxu0 0
      %1620 = vmatpush2.bf16.msra.mxu0 0
      %1621 = vmatprep.subr.bf16.mxu0 0
      %1622 = vmatpush2.bf16.msra.mxu0 0
      %1623 = vmatprep.subr.bf16.mxu0 0
      %1624 = vmatpush2.bf16.msra.mxu0 0
      %1625 = vmatprep.subr.bf16.mxu0 0
      %1626 = vmatpush2.bf16.msra.mxu0 0
      %1627 = vmatprep.subr.bf16.mxu0 0
      %1628 = vmatpush2.bf16.msra.mxu0 0
      %1629 = vmatprep.subr.bf16.mxu0 0
      %1630 = vmatpush2.bf16.msra.mxu0 0
      %1631 = vmatprep.mubr.bf16.mxu0 0
      %1632 = vmatmul.mubr.bf16.gmra.mxu0 %v1588
      %v1633 = vpop.f32.mrf.mxu0
      %v1634 = vadd.f32 0.0, %v1633
      %v1635 = vpop.f32.mrf.mxu0
      %v1636 = vadd.f32 0.0, %v1635
      %v1637 = vpop.f32.mrf.mxu0
      %v1638 = vpop.f32.mrf.mxu0
      %1639 = vdwg.mxu0
      %1640 = vmatprep.subr.bf16.mxu0 0
      %1641 = vmatpush1.bf16.msra.mxu0 0
      %1642 = vmatprep.subr.bf16.mxu0 0
      %1643 = vmatpush1.bf16.msra.mxu0 0
      %1644 = vmatprep.subr.bf16.mxu0 0
      %1645 = vmatpush1.bf16.msra.mxu0 0
      %1646 = vmatprep.subr.bf16.mxu0 0
      %1647 = vmatpush1.bf16.msra.mxu0 0
      %1648 = vmatprep.subr.bf16.mxu0 0
      %1649 = vmatpush1.bf16.msra.mxu0 0
      %1650 = vmatprep.subr.bf16.mxu0 0
      %1651 = vmatpush1.bf16.msra.mxu0 0
      %1652 = vmatprep.subr.bf16.mxu0 0
      %1653 = vmatpush1.bf16.msra.mxu0 0
      %1654 = vmatprep.subr.bf16.mxu0 0
      %1655 = vmatpush1.bf16.msra.mxu0 %v1597
      %1656 = vmatprep.subr.bf16.mxu0 0
      %1657 = vmatpush2.bf16.msra.mxu0 0
      %1658 = vmatprep.subr.bf16.mxu0 0
      %1659 = vmatpush2.bf16.msra.mxu0 0
      %1660 = vmatprep.subr.bf16.mxu0 0
      %1661 = vmatpush2.bf16.msra.mxu0 0
      %1662 = vmatprep.subr.bf16.mxu0 0
      %1663 = vmatpush2.bf16.msra.mxu0 0
      %1664 = vmatprep.subr.bf16.mxu0 0
      %1665 = vmatpush2.bf16.msra.mxu0 0
      %1666 = vmatprep.subr.bf16.mxu0 0
      %1667 = vmatpush2.bf16.msra.mxu0 0
      %1668 = vmatprep.subr.bf16.mxu0 0
      %1669 = vmatpush2.bf16.msra.mxu0 0
      %1670 = vmatprep.subr.bf16.mxu0 0
      %1671 = vmatpush2.bf16.msra.mxu0 0
      %1672 = vmatprep.mubr.bf16.mxu0 0
      %1673 = vmatmul.mubr.bf16.gmra.mxu0 %v1588
      %v1674 = vpop.f32.mrf.mxu0
      %v1675 = vadd.f32 0.0, %v1674
      %v1676 = vpop.f32.mrf.mxu0
      %v1677 = vpop.f32.mrf.mxu0
      %v1678 = vpop.f32.mrf.mxu0
      %1679 = vdwg.mxu0
      %v1680 = vadd.f32 %v1551, %v1634
      %v1681 = vadd.f32 %v1552, %v1636
      %v1682 = vadd.f32 %v1553, %v1675
      %s1683 = scalar_lea.vmem %s1, 48
      %v1684 = vld [vmem:[%s1683] sm:$0x7]
      %v1685 = vld [vmem:[%s165] sm:$0xff]
      %v1687 = vcombine.high %v1685, %v1685
      %v1689 = vunpack.c.l.s4 1983009808
      %v1690 = vunpack.c.0.s8 %v1689
      %v1691 = vlaneseq
      %v1692 = vshrl.u32 %v1691, 7
      %v1693 = vsub.s32 %v1690, %v1692
      %v1694 = vrot.slane %v1685, %v1693
      %v1696 = vunpack.c.l.s4 1983009808
      %v1697 = vunpack.c.0.s8 %v1696
      %v1698 = vlaneseq
      %v1699 = vshrl.u32 %v1698, 7
      %v1700 = vsub.s32 %v1697, %v1699
      %v1701 = vrot.slane %v1687, %v1700
      %v1702 = vcombine.high %v1694, %v1694
      %v1703 = vcombine.high %v1701, %v1701
      %1704 = vrot.lane.b32.xlu0 %v1694, 32
      %v1705 = vpop.permute.xlu0 %1704
      %1706 = vrot.lane.b32.xlu0 %v1702, 32
      %v1707 = vpop.permute.xlu0 %1706
      %1708 = vrot.lane.b32.xlu0 %v1701, 32
      %v1709 = vpop.permute.xlu0 %1708
      %1710 = vrot.lane.b32.xlu0 %v1703, 32
      %v1711 = vpop.permute.xlu0 %1710
      %vm1712 = vcmask 261120
      %v1713 = vsel %vm1712, %v1705, %v1707
      %v1714 = vsel %vm1712, %v1707, %v1709
      %v1715 = vsel %vm1712, %v1709, %v1711
      %v1717 = vsel %vm206, %v1684, 0
      %v1720 = vsel %vm210, %v1713, 0
      %v1723 = vsel %vm210, %v1714, 0
      %v1726 = vsel %vm210, %v1715, 0
      %1728 = vmatprep.subr.bf16.mxu0 0
      %1729 = vmatpush1.bf16.msra.mxu0 0
      %1730 = vmatprep.subr.bf16.mxu0 0
      %1731 = vmatpush1.bf16.msra.mxu0 0
      %1732 = vmatprep.subr.bf16.mxu0 0
      %1733 = vmatpush1.bf16.msra.mxu0 0
      %1734 = vmatprep.subr.bf16.mxu0 0
      %1735 = vmatpush1.bf16.msra.mxu0 0
      %1736 = vmatprep.subr.bf16.mxu0 0
      %1737 = vmatpush1.bf16.msra.mxu0 0
      %1738 = vmatprep.subr.bf16.mxu0 0
      %1739 = vmatpush1.bf16.msra.mxu0 0
      %1740 = vmatprep.subr.bf16.mxu0 0
      %1741 = vmatpush1.bf16.msra.mxu0 0
      %1742 = vmatprep.subr.bf16.mxu0 %v1723
      %1743 = vmatpush1.bf16.msra.mxu0 %v1720
      %1744 = vmatprep.subr.bf16.mxu0 0
      %1745 = vmatpush2.bf16.msra.mxu0 0
      %1746 = vmatprep.subr.bf16.mxu0 0
      %1747 = vmatpush2.bf16.msra.mxu0 0
      %1748 = vmatprep.subr.bf16.mxu0 0
      %1749 = vmatpush2.bf16.msra.mxu0 0
      %1750 = vmatprep.subr.bf16.mxu0 0
      %1751 = vmatpush2.bf16.msra.mxu0 0
      %1752 = vmatprep.subr.bf16.mxu0 0
      %1753 = vmatpush2.bf16.msra.mxu0 0
      %1754 = vmatprep.subr.bf16.mxu0 0
      %1755 = vmatpush2.bf16.msra.mxu0 0
      %1756 = vmatprep.subr.bf16.mxu0 0
      %1757 = vmatpush2.bf16.msra.mxu0 0
      %1758 = vmatprep.subr.bf16.mxu0 0
      %1759 = vmatpush2.bf16.msra.mxu0 0
      %1760 = vmatprep.mubr.bf16.mxu0 0
      %1761 = vmatmul.mubr.bf16.gmra.mxu0 %v1717
      %v1762 = vpop.f32.mrf.mxu0
      %v1763 = vadd.f32 0.0, %v1762
      %v1764 = vpop.f32.mrf.mxu0
      %v1765 = vadd.f32 0.0, %v1764
      %v1766 = vpop.f32.mrf.mxu0
      %v1767 = vpop.f32.mrf.mxu0
      %1768 = vdwg.mxu0
      %1769 = vmatprep.subr.bf16.mxu0 0
      %1770 = vmatpush1.bf16.msra.mxu0 0
      %1771 = vmatprep.subr.bf16.mxu0 0
      %1772 = vmatpush1.bf16.msra.mxu0 0
      %1773 = vmatprep.subr.bf16.mxu0 0
      %1774 = vmatpush1.bf16.msra.mxu0 0
      %1775 = vmatprep.subr.bf16.mxu0 0
      %1776 = vmatpush1.bf16.msra.mxu0 0
      %1777 = vmatprep.subr.bf16.mxu0 0
      %1778 = vmatpush1.bf16.msra.mxu0 0
      %1779 = vmatprep.subr.bf16.mxu0 0
      %1780 = vmatpush1.bf16.msra.mxu0 0
      %1781 = vmatprep.subr.bf16.mxu0 0
      %1782 = vmatpush1.bf16.msra.mxu0 0
      %1783 = vmatprep.subr.bf16.mxu0 0
      %1784 = vmatpush1.bf16.msra.mxu0 %v1726
      %1785 = vmatprep.subr.bf16.mxu0 0
      %1786 = vmatpush2.bf16.msra.mxu0 0
      %1787 = vmatprep.subr.bf16.mxu0 0
      %1788 = vmatpush2.bf16.msra.mxu0 0
      %1789 = vmatprep.subr.bf16.mxu0 0
      %1790 = vmatpush2.bf16.msra.mxu0 0
      %1791 = vmatprep.subr.bf16.mxu0 0
      %1792 = vmatpush2.bf16.msra.mxu0 0
      %1793 = vmatprep.subr.bf16.mxu0 0
      %1794 = vmatpush2.bf16.msra.mxu0 0
      %1795 = vmatprep.subr.bf16.mxu0 0
      %1796 = vmatpush2.bf16.msra.mxu0 0
      %1797 = vmatprep.subr.bf16.mxu0 0
      %1798 = vmatpush2.bf16.msra.mxu0 0
      %1799 = vmatprep.subr.bf16.mxu0 0
      %1800 = vmatpush2.bf16.msra.mxu0 0
      %1801 = vmatprep.mubr.bf16.mxu0 0
      %1802 = vmatmul.mubr.bf16.gmra.mxu0 %v1717
      %v1803 = vpop.f32.mrf.mxu0
      %v1804 = vadd.f32 0.0, %v1803
      %v1805 = vpop.f32.mrf.mxu0
      %v1806 = vpop.f32.mrf.mxu0
      %v1807 = vpop.f32.mrf.mxu0
      %1808 = vdwg.mxu0
      %v1809 = vadd.f32 %v1680, %v1763
      %v1810 = vadd.f32 %v1681, %v1765
      %v1811 = vadd.f32 %v1682, %v1804
      %s1812 = scalar_lea.vmem %s1, 52
      %v1813 = vld [vmem:[%s1812] sm:$0x7]
      %v1815 = vsel %vm206, %v1813, 0
      %1817 = vmatprep.subr.bf16.mxu0 0
      %1818 = vmatpush1.bf16.msra.mxu0 0
      %1819 = vmatprep.subr.bf16.mxu0 0
      %1820 = vmatpush1.bf16.msra.mxu0 0
      %1821 = vmatprep.subr.bf16.mxu0 0
      %1822 = vmatpush1.bf16.msra.mxu0 0
      %1823 = vmatprep.subr.bf16.mxu0 0
      %1824 = vmatpush1.bf16.msra.mxu0 0
      %1825 = vmatprep.subr.bf16.mxu0 0
      %1826 = vmatpush1.bf16.msra.mxu0 0
      %1827 = vmatprep.subr.bf16.mxu0 0
      %1828 = vmatpush1.bf16.msra.mxu0 0
      %1829 = vmatprep.subr.bf16.mxu0 0
      %1830 = vmatpush1.bf16.msra.mxu0 0
      %1831 = vmatprep.subr.bf16.mxu0 %v704
      %1832 = vmatpush1.bf16.msra.mxu0 %v701
      %1833 = vmatprep.subr.bf16.mxu0 0
      %1834 = vmatpush2.bf16.msra.mxu0 0
      %1835 = vmatprep.subr.bf16.mxu0 0
      %1836 = vmatpush2.bf16.msra.mxu0 0
      %1837 = vmatprep.subr.bf16.mxu0 0
      %1838 = vmatpush2.bf16.msra.mxu0 0
      %1839 = vmatprep.subr.bf16.mxu0 0
      %1840 = vmatpush2.bf16.msra.mxu0 0
      %1841 = vmatprep.subr.bf16.mxu0 0
      %1842 = vmatpush2.bf16.msra.mxu0 0
      %1843 = vmatprep.subr.bf16.mxu0 0
      %1844 = vmatpush2.bf16.msra.mxu0 0
      %1845 = vmatprep.subr.bf16.mxu0 0
      %1846 = vmatpush2.bf16.msra.mxu0 0
      %1847 = vmatprep.subr.bf16.mxu0 0
      %1848 = vmatpush2.bf16.msra.mxu0 0
      %1849 = vmatprep.mubr.bf16.mxu0 0
      %1850 = vmatmul.mubr.bf16.gmra.mxu0 %v1815
      %v1851 = vpop.f32.mrf.mxu0
      %v1852 = vadd.f32 0.0, %v1851
      %v1853 = vpop.f32.mrf.mxu0
      %v1854 = vadd.f32 0.0, %v1853
      %v1855 = vpop.f32.mrf.mxu0
      %v1856 = vpop.f32.mrf.mxu0
      %1857 = vdwg.mxu0
      %1858 = vmatprep.subr.bf16.mxu0 0
      %1859 = vmatpush1.bf16.msra.mxu0 0
      %1860 = vmatprep.subr.bf16.mxu0 0
      %1861 = vmatpush1.bf16.msra.mxu0 0
      %1862 = vmatprep.subr.bf16.mxu0 0
      %1863 = vmatpush1.bf16.msra.mxu0 0
      %1864 = vmatprep.subr.bf16.mxu0 0
      %1865 = vmatpush1.bf16.msra.mxu0 0
      %1866 = vmatprep.subr.bf16.mxu0 0
      %1867 = vmatpush1.bf16.msra.mxu0 0
      %1868 = vmatprep.subr.bf16.mxu0 0
      %1869 = vmatpush1.bf16.msra.mxu0 0
      %1870 = vmatprep.subr.bf16.mxu0 0
      %1871 = vmatpush1.bf16.msra.mxu0 0
      %1872 = vmatprep.subr.bf16.mxu0 0
      %1873 = vmatpush1.bf16.msra.mxu0 %v707
      %1874 = vmatprep.subr.bf16.mxu0 0
      %1875 = vmatpush2.bf16.msra.mxu0 0
      %1876 = vmatprep.subr.bf16.mxu0 0
      %1877 = vmatpush2.bf16.msra.mxu0 0
      %1878 = vmatprep.subr.bf16.mxu0 0
      %1879 = vmatpush2.bf16.msra.mxu0 0
      %1880 = vmatprep.subr.bf16.mxu0 0
      %1881 = vmatpush2.bf16.msra.mxu0 0
      %1882 = vmatprep.subr.bf16.mxu0 0
      %1883 = vmatpush2.bf16.msra.mxu0 0
      %1884 = vmatprep.subr.bf16.mxu0 0
      %1885 = vmatpush2.bf16.msra.mxu0 0
      %1886 = vmatprep.subr.bf16.mxu0 0
      %1887 = vmatpush2.bf16.msra.mxu0 0
      %1888 = vmatprep.subr.bf16.mxu0 0
      %1889 = vmatpush2.bf16.msra.mxu0 0
      %1890 = vmatprep.mubr.bf16.mxu0 0
      %1891 = vmatmul.mubr.bf16.gmra.mxu0 %v1815
      %v1892 = vpop.f32.mrf.mxu0
      %v1893 = vadd.f32 0.0, %v1892
      %v1894 = vpop.f32.mrf.mxu0
      %v1895 = vpop.f32.mrf.mxu0
      %v1896 = vpop.f32.mrf.mxu0
      %1897 = vdwg.mxu0
      %v1898 = vadd.f32 %v1809, %v1852
      %v1899 = vadd.f32 %v1810, %v1854
      %v1900 = vadd.f32 %v1811, %v1893
      %s1901 = scalar_lea.vmem %s1, 56
      %v1902 = vld [vmem:[%s1901] sm:$0x7]
      %v1903 = vld [vmem:[%s165] sm:$0xff]
      %v1905 = vcombine.high %v1903, %v1903
      %v1907 = vunpack.c.l.s4 1983009808
      %v1908 = vunpack.c.0.s8 %v1907
      %v1909 = vlaneseq
      %v1910 = vshrl.u32 %v1909, 7
      %v1911 = vsub.s32 %v1908, %v1910
      %v1912 = vrot.slane %v1903, %v1911
      %v1914 = vunpack.c.l.s4 1983009808
      %v1915 = vunpack.c.0.s8 %v1914
      %v1916 = vlaneseq
      %v1917 = vshrl.u32 %v1916, 7
      %v1918 = vsub.s32 %v1915, %v1917
      %v1919 = vrot.slane %v1905, %v1918
      %v1920 = vcombine.high %v1912, %v1912
      %v1921 = vcombine.high %v1919, %v1919
      %1922 = vrot.lane.b32.xlu0 %v1912, 24
      %v1923 = vpop.permute.xlu0 %1922
      %1924 = vrot.lane.b32.xlu0 %v1920, 24
      %v1925 = vpop.permute.xlu0 %1924
      %1926 = vrot.lane.b32.xlu0 %v1919, 24
      %v1927 = vpop.permute.xlu0 %1926
      %1928 = vrot.lane.b32.xlu0 %v1921, 24
      %v1929 = vpop.permute.xlu0 %1928
      %vm1930 = vcmask 195584
      %v1931 = vsel %vm1930, %v1923, %v1925
      %v1932 = vsel %vm1930, %v1925, %v1927
      %v1933 = vsel %vm1930, %v1927, %v1929
      %v1935 = vsel %vm206, %v1902, 0
      %v1938 = vsel %vm210, %v1931, 0
      %v1941 = vsel %vm210, %v1932, 0
      %v1944 = vsel %vm210, %v1933, 0
      %1946 = vmatprep.subr.bf16.mxu0 0
      %1947 = vmatpush1.bf16.msra.mxu0 0
      %1948 = vmatprep.subr.bf16.mxu0 0
      %1949 = vmatpush1.bf16.msra.mxu0 0
      %1950 = vmatprep.subr.bf16.mxu0 0
      %1951 = vmatpush1.bf16.msra.mxu0 0
      %1952 = vmatprep.subr.bf16.mxu0 0
      %1953 = vmatpush1.bf16.msra.mxu0 0
      %1954 = vmatprep.subr.bf16.mxu0 0
      %1955 = vmatpush1.bf16.msra.mxu0 0
      %1956 = vmatprep.subr.bf16.mxu0 0
      %1957 = vmatpush1.bf16.msra.mxu0 0
      %1958 = vmatprep.subr.bf16.mxu0 0
      %1959 = vmatpush1.bf16.msra.mxu0 0
      %1960 = vmatprep.subr.bf16.mxu0 %v1941
      %1961 = vmatpush1.bf16.msra.mxu0 %v1938
      %1962 = vmatprep.subr.bf16.mxu0 0
      %1963 = vmatpush2.bf16.msra.mxu0 0
      %1964 = vmatprep.subr.bf16.mxu0 0
      %1965 = vmatpush2.bf16.msra.mxu0 0
      %1966 = vmatprep.subr.bf16.mxu0 0
      %1967 = vmatpush2.bf16.msra.mxu0 0
      %1968 = vmatprep.subr.bf16.mxu0 0
      %1969 = vmatpush2.bf16.msra.mxu0 0
      %1970 = vmatprep.subr.bf16.mxu0 0
      %1971 = vmatpush2.bf16.msra.mxu0 0
      %1972 = vmatprep.subr.bf16.mxu0 0
      %1973 = vmatpush2.bf16.msra.mxu0 0
      %1974 = vmatprep.subr.bf16.mxu0 0
      %1975 = vmatpush2.bf16.msra.mxu0 0
      %1976 = vmatprep.subr.bf16.mxu0 0
      %1977 = vmatpush2.bf16.msra.mxu0 0
      %1978 = vmatprep.mubr.bf16.mxu0 0
      %1979 = vmatmul.mubr.bf16.gmra.mxu0 %v1935
      %v1980 = vpop.f32.mrf.mxu0
      %v1981 = vadd.f32 0.0, %v1980
      %v1982 = vpop.f32.mrf.mxu0
      %v1983 = vadd.f32 0.0, %v1982
      %v1984 = vpop.f32.mrf.mxu0
      %v1985 = vpop.f32.mrf.mxu0
      %1986 = vdwg.mxu0
      %1987 = vmatprep.subr.bf16.mxu0 0
      %1988 = vmatpush1.bf16.msra.mxu0 0
      %1989 = vmatprep.subr.bf16.mxu0 0
      %1990 = vmatpush1.bf16.msra.mxu0 0
      %1991 = vmatprep.subr.bf16.mxu0 0
      %1992 = vmatpush1.bf16.msra.mxu0 0
      %1993 = vmatprep.subr.bf16.mxu0 0
      %1994 = vmatpush1.bf16.msra.mxu0 0
      %1995 = vmatprep.subr.bf16.mxu0 0
      %1996 = vmatpush1.bf16.msra.mxu0 0
      %1997 = vmatprep.subr.bf16.mxu0 0
      %1998 = vmatpush1.bf16.msra.mxu0 0
      %1999 = vmatprep.subr.bf16.mxu0 0
      %2000 = vmatpush1.bf16.msra.mxu0 0
      %2001 = vmatprep.subr.bf16.mxu0 0
      %2002 = vmatpush1.bf16.msra.mxu0 %v1944
      %2003 = vmatprep.subr.bf16.mxu0 0
      %2004 = vmatpush2.bf16.msra.mxu0 0
      %2005 = vmatprep.subr.bf16.mxu0 0
      %2006 = vmatpush2.bf16.msra.mxu0 0
      %2007 = vmatprep.subr.bf16.mxu0 0
      %2008 = vmatpush2.bf16.msra.mxu0 0
      %2009 = vmatprep.subr.bf16.mxu0 0
      %2010 = vmatpush2.bf16.msra.mxu0 0
      %2011 = vmatprep.subr.bf16.mxu0 0
      %2012 = vmatpush2.bf16.msra.mxu0 0
      %2013 = vmatprep.subr.bf16.mxu0 0
      %2014 = vmatpush2.bf16.msra.mxu0 0
      %2015 = vmatprep.subr.bf16.mxu0 0
      %2016 = vmatpush2.bf16.msra.mxu0 0
      %2017 = vmatprep.subr.bf16.mxu0 0
      %2018 = vmatpush2.bf16.msra.mxu0 0
      %2019 = vmatprep.mubr.bf16.mxu0 0
      %2020 = vmatmul.mubr.bf16.gmra.mxu0 %v1935
      %v2021 = vpop.f32.mrf.mxu0
      %v2022 = vadd.f32 0.0, %v2021
      %v2023 = vpop.f32.mrf.mxu0
      %v2024 = vpop.f32.mrf.mxu0
      %v2025 = vpop.f32.mrf.mxu0
      %2026 = vdwg.mxu0
      %v2027 = vadd.f32 %v1898, %v1981
      %v2028 = vadd.f32 %v1899, %v1983
      %v2029 = vadd.f32 %v1900, %v2022
      %s2030 = scalar_lea.vmem %s1, 60
      %v2031 = vld [vmem:[%s2030] sm:$0x7]
      %v2032 = vld [vmem:[%s165 + $0x2] sm:$0xff]
      %v2034 = vcombine.high %v2032, %v2032
      %v2036 = vunpack.c.l.s4 1983009808
      %v2037 = vunpack.c.0.s8 %v2036
      %v2038 = vlaneseq
      %v2039 = vshrl.u32 %v2038, 7
      %v2040 = vsub.s32 %v2037, %v2039
      %v2041 = vrot.slane %v2032, %v2040
      %v2043 = vunpack.c.l.s4 1983009808
      %v2044 = vunpack.c.0.s8 %v2043
      %v2045 = vlaneseq
      %v2046 = vshrl.u32 %v2045, 7
      %v2047 = vsub.s32 %v2044, %v2046
      %v2048 = vrot.slane %v2034, %v2047
      %v2049 = vcombine.high %v2041, %v2041
      %v2050 = vcombine.high %v2048, %v2048
      %2051 = vrot.lane.b32.xlu0 %v2041, 64
      %v2052 = vpop.permute.xlu0 %2051
      %2053 = vrot.lane.b32.xlu0 %v2049, 64
      %v2054 = vpop.permute.xlu0 %2053
      %2055 = vrot.lane.b32.xlu0 %v2048, 64
      %v2056 = vpop.permute.xlu0 %2055
      %2057 = vrot.lane.b32.xlu0 %v2050, 64
      %v2058 = vpop.permute.xlu0 %2057
      %vm2059 = vcmask 523264
      %v2060 = vsel %vm2059, %v2052, %v2054
      %v2061 = vsel %vm2059, %v2054, %v2056
      %v2062 = vsel %vm2059, %v2056, %v2058
      %v2064 = vsel %vm206, %v2031, 0
      %v2067 = vsel %vm210, %v2060, 0
      %v2070 = vsel %vm210, %v2061, 0
      %v2073 = vsel %vm210, %v2062, 0
      %2075 = vmatprep.subr.bf16.mxu0 0
      %2076 = vmatpush1.bf16.msra.mxu0 0
      %2077 = vmatprep.subr.bf16.mxu0 0
      %2078 = vmatpush1.bf16.msra.mxu0 0
      %2079 = vmatprep.subr.bf16.mxu0 0
      %2080 = vmatpush1.bf16.msra.mxu0 0
      %2081 = vmatprep.subr.bf16.mxu0 0
      %2082 = vmatpush1.bf16.msra.mxu0 0
      %2083 = vmatprep.subr.bf16.mxu0 0
      %2084 = vmatpush1.bf16.msra.mxu0 0
      %2085 = vmatprep.subr.bf16.mxu0 0
      %2086 = vmatpush1.bf16.msra.mxu0 0
      %2087 = vmatprep.subr.bf16.mxu0 0
      %2088 = vmatpush1.bf16.msra.mxu0 0
      %2089 = vmatprep.subr.bf16.mxu0 %v2070
      %2090 = vmatpush1.bf16.msra.mxu0 %v2067
      %2091 = vmatprep.subr.bf16.mxu0 0
      %2092 = vmatpush2.bf16.msra.mxu0 0
      %2093 = vmatprep.subr.bf16.mxu0 0
      %2094 = vmatpush2.bf16.msra.mxu0 0
      %2095 = vmatprep.subr.bf16.mxu0 0
      %2096 = vmatpush2.bf16.msra.mxu0 0
      %2097 = vmatprep.subr.bf16.mxu0 0
      %2098 = vmatpush2.bf16.msra.mxu0 0
      %2099 = vmatprep.subr.bf16.mxu0 0
      %2100 = vmatpush2.bf16.msra.mxu0 0
      %2101 = vmatprep.subr.bf16.mxu0 0
      %2102 = vmatpush2.bf16.msra.mxu0 0
      %2103 = vmatprep.subr.bf16.mxu0 0
      %2104 = vmatpush2.bf16.msra.mxu0 0
      %2105 = vmatprep.subr.bf16.mxu0 0
      %2106 = vmatpush2.bf16.msra.mxu0 0
      %2107 = vmatprep.mubr.bf16.mxu0 0
      %2108 = vmatmul.mubr.bf16.gmra.mxu0 %v2064
      %v2109 = vpop.f32.mrf.mxu0
      %v2110 = vadd.f32 0.0, %v2109
      %v2111 = vpop.f32.mrf.mxu0
      %v2112 = vadd.f32 0.0, %v2111
      %v2113 = vpop.f32.mrf.mxu0
      %v2114 = vpop.f32.mrf.mxu0
      %2115 = vdwg.mxu0
      %2116 = vmatprep.subr.bf16.mxu0 0
      %2117 = vmatpush1.bf16.msra.mxu0 0
      %2118 = vmatprep.subr.bf16.mxu0 0
      %2119 = vmatpush1.bf16.msra.mxu0 0
      %2120 = vmatprep.subr.bf16.mxu0 0
      %2121 = vmatpush1.bf16.msra.mxu0 0
      %2122 = vmatprep.subr.bf16.mxu0 0
      %2123 = vmatpush1.bf16.msra.mxu0 0
      %2124 = vmatprep.subr.bf16.mxu0 0
      %2125 = vmatpush1.bf16.msra.mxu0 0
      %2126 = vmatprep.subr.bf16.mxu0 0
      %2127 = vmatpush1.bf16.msra.mxu0 0
      %2128 = vmatprep.subr.bf16.mxu0 0
      %2129 = vmatpush1.bf16.msra.mxu0 0
      %2130 = vmatprep.subr.bf16.mxu0 0
      %2131 = vmatpush1.bf16.msra.mxu0 %v2073
      %2132 = vmatprep.subr.bf16.mxu0 0
      %2133 = vmatpush2.bf16.msra.mxu0 0
      %2134 = vmatprep.subr.bf16.mxu0 0
      %2135 = vmatpush2.bf16.msra.mxu0 0
      %2136 = vmatprep.subr.bf16.mxu0 0
      %2137 = vmatpush2.bf16.msra.mxu0 0
      %2138 = vmatprep.subr.bf16.mxu0 0
      %2139 = vmatpush2.bf16.msra.mxu0 0
      %2140 = vmatprep.subr.bf16.mxu0 0
      %2141 = vmatpush2.bf16.msra.mxu0 0
      %2142 = vmatprep.subr.bf16.mxu0 0
      %2143 = vmatpush2.bf16.msra.mxu0 0
      %2144 = vmatprep.subr.bf16.mxu0 0
      %2145 = vmatpush2.bf16.msra.mxu0 0
      %2146 = vmatprep.subr.bf16.mxu0 0
      %2147 = vmatpush2.bf16.msra.mxu0 0
      %2148 = vmatprep.mubr.bf16.mxu0 0
      %2149 = vmatmul.mubr.bf16.gmra.mxu0 %v2064
      %v2150 = vpop.f32.mrf.mxu0
      %v2151 = vadd.f32 0.0, %v2150
      %v2152 = vpop.f32.mrf.mxu0
      %v2153 = vpop.f32.mrf.mxu0
      %v2154 = vpop.f32.mrf.mxu0
      %2155 = vdwg.mxu0
      %v2156 = vadd.f32 %v2027, %v2110
      %v2157 = vadd.f32 %v2028, %v2112
      %v2158 = vadd.f32 %v2029, %v2151
      %s2159 = scalar_lea.vmem %s1, 64
      %v2160 = vld [vmem:[%s2159] sm:$0x7]
      %v2161 = vld [vmem:[%s165 + $0x2] sm:$0xff]
      %v2163 = vcombine.high %v2161, %v2161
      %v2165 = vunpack.c.l.s4 1983009808
      %v2166 = vunpack.c.0.s8 %v2165
      %v2167 = vlaneseq
      %v2168 = vshrl.u32 %v2167, 7
      %v2169 = vsub.s32 %v2166, %v2168
      %v2170 = vrot.slane %v2161, %v2169
      %v2172 = vunpack.c.l.s4 1983009808
      %v2173 = vunpack.c.0.s8 %v2172
      %v2174 = vlaneseq
      %v2175 = vshrl.u32 %v2174, 7
      %v2176 = vsub.s32 %v2173, %v2175
      %v2177 = vrot.slane %v2163, %v2176
      %v2178 = vcombine.high %v2170, %v2170
      %v2179 = vcombine.high %v2177, %v2177
      %2180 = vrot.lane.b32.xlu0 %v2170, 60
      %v2181 = vpop.permute.xlu0 %2180
      %2182 = vrot.lane.b32.xlu0 %v2178, 60
      %v2183 = vpop.permute.xlu0 %2182
      %2184 = vrot.lane.b32.xlu0 %v2177, 60
      %v2185 = vpop.permute.xlu0 %2184
      %2186 = vrot.lane.b32.xlu0 %v2179, 60
      %v2187 = vpop.permute.xlu0 %2186
      %vm2188 = vcmask 490496
      %v2189 = vsel %vm2188, %v2181, %v2183
      %v2190 = vsel %vm2188, %v2183, %v2185
      %v2191 = vsel %vm2188, %v2185, %v2187
      %v2193 = vsel %vm206, %v2160, 0
      %v2196 = vsel %vm210, %v2189, 0
      %v2199 = vsel %vm210, %v2190, 0
      %v2202 = vsel %vm210, %v2191, 0
      %2204 = vmatprep.subr.bf16.mxu0 0
      %2205 = vmatpush1.bf16.msra.mxu0 0
      %2206 = vmatprep.subr.bf16.mxu0 0
      %2207 = vmatpush1.bf16.msra.mxu0 0
      %2208 = vmatprep.subr.bf16.mxu0 0
      %2209 = vmatpush1.bf16.msra.mxu0 0
      %2210 = vmatprep.subr.bf16.mxu0 0
      %2211 = vmatpush1.bf16.msra.mxu0 0
      %2212 = vmatprep.subr.bf16.mxu0 0
      %2213 = vmatpush1.bf16.msra.mxu0 0
      %2214 = vmatprep.subr.bf16.mxu0 0
      %2215 = vmatpush1.bf16.msra.mxu0 0
      %2216 = vmatprep.subr.bf16.mxu0 0
      %2217 = vmatpush1.bf16.msra.mxu0 0
      %2218 = vmatprep.subr.bf16.mxu0 %v2199
      %2219 = vmatpush1.bf16.msra.mxu0 %v2196
      %2220 = vmatprep.subr.bf16.mxu0 0
      %2221 = vmatpush2.bf16.msra.mxu0 0
      %2222 = vmatprep.subr.bf16.mxu0 0
      %2223 = vmatpush2.bf16.msra.mxu0 0
      %2224 = vmatprep.subr.bf16.mxu0 0
      %2225 = vmatpush2.bf16.msra.mxu0 0
      %2226 = vmatprep.subr.bf16.mxu0 0
      %2227 = vmatpush2.bf16.msra.mxu0 0
      %2228 = vmatprep.subr.bf16.mxu0 0
      %2229 = vmatpush2.bf16.msra.mxu0 0
      %2230 = vmatprep.subr.bf16.mxu0 0
      %2231 = vmatpush2.bf16.msra.mxu0 0
      %2232 = vmatprep.subr.bf16.mxu0 0
      %2233 = vmatpush2.bf16.msra.mxu0 0
      %2234 = vmatprep.subr.bf16.mxu0 0
      %2235 = vmatpush2.bf16.msra.mxu0 0
      %2236 = vmatprep.mubr.bf16.mxu0 0
      %2237 = vmatmul.mubr.bf16.gmra.mxu0 %v2193
      %v2238 = vpop.f32.mrf.mxu0
      %v2239 = vadd.f32 0.0, %v2238
      %v2240 = vpop.f32.mrf.mxu0
      %v2241 = vadd.f32 0.0, %v2240
      %v2242 = vpop.f32.mrf.mxu0
      %v2243 = vpop.f32.mrf.mxu0
      %2244 = vdwg.mxu0
      %2245 = vmatprep.subr.bf16.mxu0 0
      %2246 = vmatpush1.bf16.msra.mxu0 0
      %2247 = vmatprep.subr.bf16.mxu0 0
      %2248 = vmatpush1.bf16.msra.mxu0 0
      %2249 = vmatprep.subr.bf16.mxu0 0
      %2250 = vmatpush1.bf16.msra.mxu0 0
      %2251 = vmatprep.subr.bf16.mxu0 0
      %2252 = vmatpush1.bf16.msra.mxu0 0
      %2253 = vmatprep.subr.bf16.mxu0 0
      %2254 = vmatpush1.bf16.msra.mxu0 0
      %2255 = vmatprep.subr.bf16.mxu0 0
      %2256 = vmatpush1.bf16.msra.mxu0 0
      %2257 = vmatprep.subr.bf16.mxu0 0
      %2258 = vmatpush1.bf16.msra.mxu0 0
      %2259 = vmatprep.subr.bf16.mxu0 0
      %2260 = vmatpush1.bf16.msra.mxu0 %v2202
      %2261 = vmatprep.subr.bf16.mxu0 0
      %2262 = vmatpush2.bf16.msra.mxu0 0
      %2263 = vmatprep.subr.bf16.mxu0 0
      %2264 = vmatpush2.bf16.msra.mxu0 0
      %2265 = vmatprep.subr.bf16.mxu0 0
      %2266 = vmatpush2.bf16.msra.mxu0 0
      %2267 = vmatprep.subr.bf16.mxu0 0
      %2268 = vmatpush2.bf16.msra.mxu0 0
      %2269 = vmatprep.subr.bf16.mxu0 0
      %2270 = vmatpush2.bf16.msra.mxu0 0
      %2271 = vmatprep.subr.bf16.mxu0 0
      %2272 = vmatpush2.bf16.msra.mxu0 0
      %2273 = vmatprep.subr.bf16.mxu0 0
      %2274 = vmatpush2.bf16.msra.mxu0 0
      %2275 = vmatprep.subr.bf16.mxu0 0
      %2276 = vmatpush2.bf16.msra.mxu0 0
      %2277 = vmatprep.mubr.bf16.mxu0 0
      %2278 = vmatmul.mubr.bf16.gmra.mxu0 %v2193
      %v2279 = vpop.f32.mrf.mxu0
      %v2280 = vadd.f32 0.0, %v2279
      %v2281 = vpop.f32.mrf.mxu0
      %v2282 = vpop.f32.mrf.mxu0
      %v2283 = vpop.f32.mrf.mxu0
      %2284 = vdwg.mxu0
      %v2285 = vadd.f32 %v2156, %v2239
      %v2286 = vadd.f32 %v2157, %v2241
      %v2287 = vadd.f32 %v2158, %v2280
      %s2288 = scalar_lea.vmem %s1, 68
      %v2289 = vld [vmem:[%s2288] sm:$0x7]
      %v2290 = vld [vmem:[%s165 + $0x2] sm:$0xff]
      %v2292 = vcombine.high %v2290, %v2290
      %v2294 = vunpack.c.l.s4 1983009808
      %v2295 = vunpack.c.0.s8 %v2294
      %v2296 = vlaneseq
      %v2297 = vshrl.u32 %v2296, 7
      %v2298 = vsub.s32 %v2295, %v2297
      %v2299 = vrot.slane %v2290, %v2298
      %v2301 = vunpack.c.l.s4 1983009808
      %v2302 = vunpack.c.0.s8 %v2301
      %v2303 = vlaneseq
      %v2304 = vshrl.u32 %v2303, 7
      %v2305 = vsub.s32 %v2302, %v2304
      %v2306 = vrot.slane %v2292, %v2305
      %v2307 = vcombine.high %v2299, %v2299
      %v2308 = vcombine.high %v2306, %v2306
      %2309 = vrot.lane.b32.xlu0 %v2299, 56
      %v2310 = vpop.permute.xlu0 %2309
      %2311 = vrot.lane.b32.xlu0 %v2307, 56
      %v2312 = vpop.permute.xlu0 %2311
      %2313 = vrot.lane.b32.xlu0 %v2306, 56
      %v2314 = vpop.permute.xlu0 %2313
      %2315 = vrot.lane.b32.xlu0 %v2308, 56
      %v2316 = vpop.permute.xlu0 %2315
      %vm2317 = vcmask 457728
      %v2318 = vsel %vm2317, %v2310, %v2312
      %v2319 = vsel %vm2317, %v2312, %v2314
      %v2320 = vsel %vm2317, %v2314, %v2316
      %v2322 = vsel %vm206, %v2289, 0
      %v2325 = vsel %vm210, %v2318, 0
      %v2328 = vsel %vm210, %v2319, 0
      %v2331 = vsel %vm210, %v2320, 0
      %2333 = vmatprep.subr.bf16.mxu0 0
      %2334 = vmatpush1.bf16.msra.mxu0 0
      %2335 = vmatprep.subr.bf16.mxu0 0
      %2336 = vmatpush1.bf16.msra.mxu0 0
      %2337 = vmatprep.subr.bf16.mxu0 0
      %2338 = vmatpush1.bf16.msra.mxu0 0
      %2339 = vmatprep.subr.bf16.mxu0 0
      %2340 = vmatpush1.bf16.msra.mxu0 0
      %2341 = vmatprep.subr.bf16.mxu0 0
      %2342 = vmatpush1.bf16.msra.mxu0 0
      %2343 = vmatprep.subr.bf16.mxu0 0
      %2344 = vmatpush1.bf16.msra.mxu0 0
      %2345 = vmatprep.subr.bf16.mxu0 0
      %2346 = vmatpush1.bf16.msra.mxu0 0
      %2347 = vmatprep.subr.bf16.mxu0 %v2328
      %2348 = vmatpush1.bf16.msra.mxu0 %v2325
      %2349 = vmatprep.subr.bf16.mxu0 0
      %2350 = vmatpush2.bf16.msra.mxu0 0
      %2351 = vmatprep.subr.bf16.mxu0 0
      %2352 = vmatpush2.bf16.msra.mxu0 0
      %2353 = vmatprep.subr.bf16.mxu0 0
      %2354 = vmatpush2.bf16.msra.mxu0 0
      %2355 = vmatprep.subr.bf16.mxu0 0
      %2356 = vmatpush2.bf16.msra.mxu0 0
      %2357 = vmatprep.subr.bf16.mxu0 0
      %2358 = vmatpush2.bf16.msra.mxu0 0
      %2359 = vmatprep.subr.bf16.mxu0 0
      %2360 = vmatpush2.bf16.msra.mxu0 0
      %2361 = vmatprep.subr.bf16.mxu0 0
      %2362 = vmatpush2.bf16.msra.mxu0 0
      %2363 = vmatprep.subr.bf16.mxu0 0
      %2364 = vmatpush2.bf16.msra.mxu0 0
      %2365 = vmatprep.mubr.bf16.mxu0 0
      %2366 = vmatmul.mubr.bf16.gmra.mxu0 %v2322
      %v2367 = vpop.f32.mrf.mxu0
      %v2368 = vadd.f32 0.0, %v2367
      %v2369 = vpop.f32.mrf.mxu0
      %v2370 = vadd.f32 0.0, %v2369
      %v2371 = vpop.f32.mrf.mxu0
      %v2372 = vpop.f32.mrf.mxu0
      %2373 = vdwg.mxu0
      %2374 = vmatprep.subr.bf16.mxu0 0
      %2375 = vmatpush1.bf16.msra.mxu0 0
      %2376 = vmatprep.subr.bf16.mxu0 0
      %2377 = vmatpush1.bf16.msra.mxu0 0
      %2378 = vmatprep.subr.bf16.mxu0 0
      %2379 = vmatpush1.bf16.msra.mxu0 0
      %2380 = vmatprep.subr.bf16.mxu0 0
      %2381 = vmatpush1.bf16.msra.mxu0 0
      %2382 = vmatprep.subr.bf16.mxu0 0
      %2383 = vmatpush1.bf16.msra.mxu0 0
      %2384 = vmatprep.subr.bf16.mxu0 0
      %2385 = vmatpush1.bf16.msra.mxu0 0
      %2386 = vmatprep.subr.bf16.mxu0 0
      %2387 = vmatpush1.bf16.msra.mxu0 0
      %2388 = vmatprep.subr.bf16.mxu0 0
      %2389 = vmatpush1.bf16.msra.mxu0 %v2331
      %2390 = vmatprep.subr.bf16.mxu0 0
      %2391 = vmatpush2.bf16.msra.mxu0 0
      %2392 = vmatprep.subr.bf16.mxu0 0
      %2393 = vmatpush2.bf16.msra.mxu0 0
      %2394 = vmatprep.subr.bf16.mxu0 0
      %2395 = vmatpush2.bf16.msra.mxu0 0
      %2396 = vmatprep.subr.bf16.mxu0 0
      %2397 = vmatpush2.bf16.msra.mxu0 0
      %2398 = vmatprep.subr.bf16.mxu0 0
      %2399 = vmatpush2.bf16.msra.mxu0 0
      %2400 = vmatprep.subr.bf16.mxu0 0
      %2401 = vmatpush2.bf16.msra.mxu0 0
      %2402 = vmatprep.subr.bf16.mxu0 0
      %2403 = vmatpush2.bf16.msra.mxu0 0
      %2404 = vmatprep.subr.bf16.mxu0 0
      %2405 = vmatpush2.bf16.msra.mxu0 0
      %2406 = vmatprep.mubr.bf16.mxu0 0
      %2407 = vmatmul.mubr.bf16.gmra.mxu0 %v2322
      %v2408 = vpop.f32.mrf.mxu0
      %v2409 = vadd.f32 0.0, %v2408
      %v2410 = vpop.f32.mrf.mxu0
      %v2411 = vpop.f32.mrf.mxu0
      %v2412 = vpop.f32.mrf.mxu0
      %2413 = vdwg.mxu0
      %v2414 = vadd.f32 %v2285, %v2368
      %v2415 = vadd.f32 %v2286, %v2370
      %v2416 = vadd.f32 %v2287, %v2409
      %v2417 = vld [vmem:[%s2] sm:$0x3f]
      %2419 = vset.pattern.permute.xlu0 0
      %2420 = vperm.xlu0 %2419, %v2417
      %v2421 = vpop.permute.xlu0 %2420
      %v2423 = vadd.f32 %v2414, %v2421
      %v2424 = vadd.f32 %v2415, %v2421
      %v2425 = vadd.f32 %v2416, %v2421
      %2426 = vst [vmem:[%s170] sm:$0x3f] %v2423
      %2427 = vst [vmem:[%s170 + $0x8] sm:$0x3f] %v2424
      %2428 = vst [vmem:[%s170 + $0x10] sm:$0x3f] %v2425
      %p2429 = scmp.lt.s32.totalorder %s14, 1
      %s2430 = scalar_select %p2429, %s14, 1
      %s2431 = smul.addr %s2430, 3
      %s2432 = smul.addr %s2431, 8
      %s2433 = scalar_lea.vmem %s3, %s2432
      // Predicated region
      $region33: #{tpu_custom_call.1} parent=31 // pred_check
        %p2434 = pneg %p100
      $region34: #{tpu_custom_call.1} parent=31 // pred_check_branch
        %2436 = sbr.rel (%p2434) target = $region36
      $region35: #{tpu_custom_call.1} parent=31 // pred_region
        _
      $region36: #{tpu_custom_call.1} parent=31 // pred_fallthru
        _
    $region32: #{tpu_custom_call.1} parent=5 // pred_fallthru
      _
    %p2437 = scmp.le.s32.totalorder 2, %s9
    // Predicated region
    $region37: #{tpu_custom_call.1} parent=5 // pred_check
      %p2438 = pneg %p2437
    $region38: #{tpu_custom_call.1} parent=5 // pred_check_branch
      %2440 = sbr.rel (%p2438) target = $region40
    $region39: #{tpu_custom_call.1} parent=5 // pred_region
      %s2441 = ssub.s32 %s9, 2
      // Predicated region
      $region41: #{tpu_custom_call.1} parent=39 // pred_check
        %p2442 = pneg %p106
      $region42: #{tpu_custom_call.1} parent=39 // pred_check_branch
        %2444 = sbr.rel (%p2442) target = $region44
      $region43: #{tpu_custom_call.1} parent=39 // pred_region
        %p2445 = scmp.lt.s32.totalorder %s15, 1
        %s2446 = scalar_select %p2445, %s15, 1
        %s2447 = smul.addr %s2446, 3
        %s2448 = smul.addr %s2447, 8
        %s2449 = scalar_lea.vmem %s3, %s2448
      $region44: #{tpu_custom_call.1} parent=39 // pred_fallthru
        _
    $region40: #{tpu_custom_call.1} parent=5 // pred_fallthru
      _
  $region6: #{tpu_custom_call.1} parent=0 // loop_footer
    %s13 = sadd.s32 1, %s9
  $region7: #{tpu_custom_call.1} parent=0 // loop_footer_branch
    %8 = sbr.rel target = $region3
  $region8: #{tpu_custom_call.1} parent=0 // loop_exit
    _

</llo_original>
